<compile_context>
chip_gen: v5e
topology: v5e:2x2
jax: 0.10.0
libtpu: 0.0.40
codegen_flags: <defaults>
</compile_context>

<pallas_src>
import math
from functools import partial

import jax
import jax.numpy as jnp
from jax.experimental import pallas as pl
from jax.experimental.pallas import tpu as pltpu

LN_EPS = 1e-5  # PyTorch nn.LayerNorm default


def _layernorm(x, w, b):
    mu = jnp.mean(x, axis=-1, keepdims=True)
    var = jnp.mean((x - mu) ** 2, axis=-1, keepdims=True)
    return (x - mu) * jax.lax.rsqrt(var + LN_EPS) * w + b


# ----------------------------------------------------------------------------
# Host-side, one-time parameter packing (algebraic folds + lane-dense layout)
# ----------------------------------------------------------------------------
def pack_params(gate, experts):
    f32, bf16 = jnp.float32, jnp.bfloat16
    E, D_in, H = experts["w_in"].shape
    D_out = experts["w_out"].shape[2]
    EH = E * H

    inv_t = (1.0 / gate["temperature"][0]).astype(f32)

    # ---- gate folds: logits = relu(LN2(h1)) @ (w2 @ w3)/T + (b2 @ w3 + b3)/T ----
    gw23 = (gate["w2"] @ gate["w3"]) * inv_t                      # [256, E]
    gb23 = (gate["b2"] @ gate["w3"] + gate["b3"]) * inv_t         # [1, E]

    # ---- expert first layer fused along lanes and concatenated with gate w0 ----
    w_in_packed = jnp.transpose(experts["w_in"], (1, 0, 2)).reshape(D_in, EH)
    w_first = jnp.concatenate([gate["w0"], w_in_packed], axis=1)  # [D_in, 256+EH]

    # ---- block-diagonal hidden-1 weight (the only remaining big weight) ----
    eye = jnp.eye(E, dtype=f32)
    wh1_bd = (eye[:, None, :, None] * experts["w_h1"][:, :, None, :]).reshape(EH, EH)

    # ---- fold w_h2 @ w_out (no nonlinearity in between), row-stacked ----
    w_fold = jnp.einsum("ehk,eko->eho", experts["w_h2"], experts["w_out"])  # [E,H,D_out]
    w_stack = w_fold.reshape(EH, D_out)
    b_stack = (jnp.einsum("exk,eko->exo", experts["b_h2"], experts["w_out"])
               + experts["b_out"]).reshape(E, D_out)

    # ---- 0/1 chunk indicators (exact in bf16) ----
    seg = (jnp.arange(EH)[:, None] // H == jnp.arange(E)[None, :]).astype(f32)  # [EH,E]
    zseg = jnp.zeros_like(seg)
    seg2 = jnp.concatenate(
        [jnp.concatenate([seg, zseg], axis=1),
         jnp.concatenate([zseg, seg], axis=1)], axis=0)            # [2EH, 2E]
    seg2T = seg2.T                                                 # [2E, 2EH]
    segT = seg.T                                                   # [E, EH]

    # ---- bias / LayerNorm vectors packed into two row-indexed tables ----
    vecs256 = jnp.concatenate([gate["b0"], gate["ln1w"], gate["ln1b"],
                               gate["b1"], gate["ln2w"], gate["ln2b"]], axis=0)  # [6,256]
    vecs384 = jnp.concatenate([experts["b_in"].reshape(1, EH),
                               experts["ln1w"].reshape(1, EH),
                               experts["ln1b"].reshape(1, EH),
                               experts["b_h1"].reshape(1, EH),
                               experts["ln2w"].reshape(1, EH),
                               experts["ln2b"].reshape(1, EH)], axis=0)          # [6,384]

    return {
        "w_first": w_first.astype(f32),
        "vecs256": vecs256.astype(f32),
        "gw1": gate["w1"].astype(f32),
        "gw23": gw23.astype(f32),
        "gb23": gb23.astype(f32),
        "vecs384": vecs384.astype(f32),
        "wh1": wh1_bd.astype(bf16),
        "w_stack": w_stack.astype(bf16),
        "b_stack": b_stack.astype(f32),
        "seg2": seg2.astype(bf16),    # stats indicator (bf16 MXU)
        "seg2T": seg2T.astype(f32),   # broadcast indicator (kept f32: multiplies acts)
        "segT": segT.astype(bf16),    # combine broadcast (bf16 MXU)
    }


# ----------------------------------------------------------------------------
# Fused MoE kernel: gate MLP -> softmax -> top-k -> all experts -> weighted sum
# ----------------------------------------------------------------------------
def run_moe(x, p, *, top_k):
    B = x.shape[0]
    E = p["gw23"].shape[1]
    EH = p["wh1"].shape[0]
    H = EH // E
    D_out = p["w_stack"].shape[1]
    G = p["gw1"].shape[0]                      # gate hidden width (256)
    k = min(top_k, E)
    inv_h = 1.0 / float(H)

    def kernel(x_ref, wfirst, v256, gw1, gw23, gb23, v384,
               wh1, wstk, bstk, seg2_ref, seg2T_ref, segT_ref,
               out_ref, probs_ref):
        f32, bf16 = jnp.float32, jnp.bfloat16
        x = x_ref[...]
        v256v = v256[...]                      # [6, G]
        v384v = v384[...]                      # [6, EH]

        # ---- fused first layer: gate input-layer + ALL expert input-layers in ONE
        #      [B, D_in] @ [D_in, G+EH] f32 matmul; slice at lane G (multiple of 128).
        first = jnp.dot(x, wfirst[...], preferred_element_type=f32)      # [B, G+EH]
        g0 = jnp.maximum(first[:, :G] + v256v[0:1, :], 0.0)
        a0 = jnp.maximum(first[:, G:] + v384v[0:1, :], 0.0)

        # ---- gating network (kept f32 so the discrete top-k routing is bit-stable
        #      vs. the f32 reference; only 2 small matmuls, gw2@gw3 folded on host) ----
        t = jnp.maximum(_layernorm(g0, v256v[1:2, :], v256v[2:3, :]), 0.0)
        g1 = jnp.dot(t, gw1[...], preferred_element_type=f32) + v256v[3:4, :] + g0
        t = jnp.maximum(_layernorm(g1, v256v[4:5, :], v256v[5:6, :]), 0.0)
        logits = jnp.dot(t, gw23[...], preferred_element_type=f32) + gb23[...]
        mx = jnp.max(logits, axis=-1, keepdims=True)
        ex = jnp.exp(logits - mx)
        probs = ex / jnp.sum(ex, axis=-1, keepdims=True)   # exact divide: feeds LB loss
        probs_ref[...] = probs

        # ---- in-kernel top-k selection + renormalisation ----
        lane = jax.lax.broadcasted_iota(jnp.int32, (B, E), 1).astype(f32)
        remaining = probs
        selected = jnp.zeros((B, E), f32)
        for _ in range(k):                                 # tiny static unroll
            mmax = jnp.max(remaining, axis=-1, keepdims=True)
            cand = jnp.where(remaining >= mmax, lane, float(E))
            first_hit = lane == jnp.min(cand, axis=-1, keepdims=True)  # lowest idx on ties
            selected = jnp.maximum(selected, first_hit.astype(f32))
            remaining = jnp.where(first_hit, -jnp.inf, remaining)
        combine = probs * selected
        combine = combine * pl.reciprocal(
            jnp.sum(combine, axis=-1, keepdims=True), approx=True)      # [B, E]

        # ---- all experts at once (lane-dense [B, E*H] slabs, bf16 MXU operands) ----
        seg2 = seg2_ref[...]        # [2EH, 2E] bf16
        seg2T = seg2T_ref[...]      # [2E, 2EH] f32

        def chunk_layernorm(v, gamma, beta):
            # per-expert-chunk LN with TWO matmuls: stats (sum v, sum v^2) + broadcast.
            cat = jnp.concatenate([v, v * v], axis=-1)                        # [B, 2EH]
            stats = jnp.dot(cat.astype(bf16), seg2,
                            preferred_element_type=f32) * inv_h               # [B, 2E]
            mean = stats[:, :E]
            var = jnp.maximum(stats[:, E:] - mean * mean, 0.0)                # E[x^2]-m^2
            scale = jax.lax.rsqrt(var + LN_EPS)
            ss = jnp.concatenate([scale, -mean * scale], axis=-1)             # [B, 2E]
            ssf = jnp.dot(ss, seg2T, preferred_element_type=f32)              # [B, 2EH]
            return (v * ssf[:, :EH] + ssf[:, EH:]) * gamma + beta

        t1 = jnp.maximum(chunk_layernorm(a0, v384v[1:2, :], v384v[2:3, :]), 0.0)
        a1 = (jnp.dot(t1.astype(bf16), wh1[...], preferred_element_type=f32)
              + v384v[3:4, :] + a0)                                           # [B, EH]
        t2 = chunk_layernorm(a1, v384v[4:5, :], v384v[5:6, :])
        t2 = t2 * jax.nn.sigmoid(t2)                                          # SiLU

        # combine-before-projection: broadcast gate weights over each expert's lanes,
        # then ONE [B, EH] @ [EH, D_out] matmul with the host-folded (w_h2 @ w_out),
        # plus a tiny [B, E] @ [E, D_out] matmul for the folded biases.
        comb_f = jnp.dot(combine.astype(bf16), segT_ref[...],
                         preferred_element_type=f32)                          # [B, EH]
        out = jnp.dot((t2 * comb_f).astype(bf16), wstk[...],
                      preferred_element_type=f32)
        out = out + jnp.dot(combine, bstk[...], preferred_element_type=f32)
        out_ref[...] = out

    # TODO(synk): at larger batch, add a leading batch grid axis with
    # dimension_semantics=("parallel",) (engages the v7x second TensorCore) and, at
    # production scale, use PrefetchScalarGridSpec scalar-prefetch offsets for sparse
    # (token, expert) dispatch; dense lane-fused compute wins at these tiny shapes.
    vmem = pl.BlockSpec(memory_space=pltpu.MemorySpace.VMEM)
    out, probs = pl.pallas_call(
        kernel,
        out_shape=(jax.ShapeDtypeStruct((B, D_out), jnp.float32),
                   jax.ShapeDtypeStruct((B, E), jnp.float32)),
        in_specs=[vmem] * 13,
        out_specs=(vmem, vmem),
        compiler_params=pltpu.CompilerParams(vmem_limit_bytes=4 * 1024 * 1024),
    )(x, p["w_first"], p["vecs256"], p["gw1"], p["gw23"], p["gb23"], p["vecs384"],
      p["wh1"], p["w_stack"], p["b_stack"], p["seg2"], p["seg2T"], p["segT"])
    return out, probs


# ----------------------------------------------------------------------------
# Full MoELayer forward (eval mode)
# ----------------------------------------------------------------------------
def moe_forward(x, packed, *, num_experts, top_k):
    final_output, gate_probs = run_moe(x, packed, top_k=top_k)

    # load-balancing loss: scalar glue on a length-E vector, plain JAX
    usage = jnp.mean(gate_probs, axis=0)
    ideal = 1.0 / num_experts
    log_u = jnp.log(usage + 1e-8)
    kl_loss = jnp.sum(ideal * (math.log(ideal) - log_u))   # F.kl_div(log_u, uniform, 'sum')
    variance_loss = jnp.sum((usage - ideal) ** 2)
    entropy = -jnp.sum(usage * log_u)
    entropy_loss = 1.0 - entropy / math.log(num_experts)
    load_balancing_loss = (0.5 * kl_loss + 0.3 * variance_loss + 0.2 * entropy_loss) * 0.05

    return final_output, load_balancing_loss, gate_probs


# ----------------------------------------------------------------------------
# Deterministic parameter construction (shapes follow the PyTorch __init__)
# ----------------------------------------------------------------------------
def make_params(key, input_dim, hidden_dim, output_dim, num_experts):
    H, H2 = hidden_dim, hidden_dim // 2
    ks = jax.random.split(key, 16)

    def rnd(k, shape, scale):
        return (jax.random.normal(k, shape, jnp.float32) * scale).astype(jnp.float32)

    gate = {
        "w0": rnd(ks[0], (input_dim, 256), 0.5 * math.sqrt(2.0 / (input_dim + 256))),
        "b0": jnp.zeros((1, 256), jnp.float32),
        "ln1w": jnp.ones((1, 256), jnp.float32), "ln1b": jnp.zeros((1, 256), jnp.float32),
        "w1": rnd(ks[1], (256, 256), 0.5 * math.sqrt(2.0 / 512)),
        "b1": jnp.full((1, 256), 0.1, jnp.float32),
        "ln2w": jnp.ones((1, 256), jnp.float32), "ln2b": jnp.zeros((1, 256), jnp.float32),
        "w2": rnd(ks[2], (256, 128), 0.5 * math.sqrt(2.0 / 384)),
        "b2": jnp.full((1, 128), 0.1, jnp.float32),
        "w3": rnd(ks[3], (128, num_experts), 0.1 * math.sqrt(2.0 / (128 + num_experts))),
        "b3": jnp.zeros((1, num_experts), jnp.float32),
        "temperature": jnp.ones((1,), jnp.float32),
    }
    E = num_experts
    experts = {
        "w_in": rnd(ks[4], (E, input_dim, H), math.sqrt(2.0 / input_dim)),
        "b_in": jnp.full((E, 1, H), 0.1, jnp.float32),
        "ln1w": jnp.ones((E, 1, H), jnp.float32), "ln1b": jnp.zeros((E, 1, H), jnp.float32),
        "w_h1": rnd(ks[5], (E, H, H), math.sqrt(2.0 / H)),
        "b_h1": jnp.full((E, 1, H), 0.1, jnp.float32),
        "ln2w": jnp.ones((E, 1, H), jnp.float32), "ln2b": jnp.zeros((E, 1, H), jnp.float32),
        "w_h2": rnd(ks[6], (E, H, H2), math.sqrt(2.0 / H)),
        "b_h2": jnp.full((E, 1, H2), 0.1, jnp.float32),
        "w_out": rnd(ks[7], (E, H2, output_dim), 0.1 * math.sqrt(2.0 / (H2 + output_dim))),
        "b_out": jnp.zeros((E, 1, output_dim), jnp.float32),
    }
    return gate, experts


# ----------------------------------------------------------------------------
# Pure-JAX reference (unpacked per-expert math, exact softmax / top-k)
# ----------------------------------------------------------------------------
def moe_reference(x, gate, experts, *, num_experts, top_k):
    h0 = jax.nn.relu(x @ gate["w0"] + gate["b0"])
    t = jax.nn.relu(_layernorm(h0, gate["ln1w"], gate["ln1b"]))
    h1 = t @ gate["w1"] + gate["b1"] + h0
    t = jax.nn.relu(_layernorm(h1, gate["ln2w"], gate["ln2b"]))
    h2 = t @ gate["w2"] + gate["b2"]
    logits = (h2 @ gate["w3"] + gate["b3"]) / gate["temperature"][0]
    gate_probs = jax.nn.softmax(logits, axis=-1)

    k = min(top_k, num_experts)
    tp, ti = jax.lax.top_k(gate_probs, k)
    tp = tp / jnp.sum(tp, axis=1, keepdims=True)
    combine = jnp.sum(jax.nn.one_hot(ti, num_experts) * tp[..., None], axis=1)

    outs = []
    for e in range(num_experts):
        a0 = jax.nn.relu(x @ experts["w_in"][e] + experts["b_in"][e])
        t = jax.nn.relu(_layernorm(a0, experts["ln1w"][e], experts["ln1b"][e]))
        a1 = t @ experts["w_h1"][e] + experts["b_h1"][e] + a0
        t = _layernorm(a1, experts["ln2w"][e], experts["ln2b"][e])
        t = t * jax.nn.sigmoid(t)
        a2 = t @ experts["w_h2"][e] + experts["b_h2"][e]
        outs.append(a2 @ experts["w_out"][e] + experts["b_out"][e])
    expert_out = jnp.stack(outs, axis=1)                      # [B, E, D_out]
    final = jnp.sum(combine[:, :, None] * expert_out, axis=1)
    return final, gate_probs


if __name__ == "__main__":
    B, INPUT_DIM, HIDDEN_DIM, OUTPUT_DIM = 8, 32, 32, 16
    NUM_EXPERTS, TOP_K = 12, 4

    key = jax.random.PRNGKey(0)
    kx, kp = jax.random.split(key)
    x = jax.random.normal(kx, (B, INPUT_DIM), jnp.float32)
    gate_params, expert_params = make_params(kp, INPUT_DIM, HIDDEN_DIM, OUTPUT_DIM,
                                             NUM_EXPERTS)

    # one-time host-side packing; folds computed at full f32 precision so they stay
    # exact algebraic identities (routing-critical gate fold in particular).
    with jax.default_matmul_precision("float32"):
        packed = pack_params(gate_params, expert_params)

    fwd = jax.jit(partial(moe_forward, num_experts=NUM_EXPERTS, top_k=TOP_K))
    final_output, lb_loss, gate_probs = fwd(x, packed)
    jax.block_until_ready((final_output, lb_loss, gate_probs))

    # sanity check against a pure-JAX reference; gate probs stay tight (f32 gate path,
    # exact softmax divide), final output tolerance is loosened because the expert-path
    # MXU operands are bf16 (per the perf review).
    ref_out, ref_probs = moe_reference(x, gate_params, expert_params,
                                       num_experts=NUM_EXPERTS, top_k=TOP_K)
    assert jnp.allclose(gate_probs, ref_probs, atol=5e-3, rtol=5e-3), \
        float(jnp.max(jnp.abs(gate_probs - ref_probs)))
    assert jnp.allclose(final_output, ref_out, atol=2e-2, rtol=2e-2), \
        float(jnp.max(jnp.abs(final_output - ref_out)))
    assert bool(jnp.isfinite(lb_loss))

    print("KERNEL_OK")
</pallas_src>

<mosaic_0001>
module attributes {stable_mosaic.version = 11 : i64} {
  func.func @kernel(%arg0: memref<8x32xf32, #tpu.memory_space<vmem>>, %arg1: memref<32x640xf32, #tpu.memory_space<vmem>>, %arg2: memref<6x256xf32, #tpu.memory_space<vmem>>, %arg3: memref<256x256xf32, #tpu.memory_space<vmem>>, %arg4: memref<256x12xf32, #tpu.memory_space<vmem>>, %arg5: memref<1x12xf32, #tpu.memory_space<vmem>>, %arg6: memref<6x384xf32, #tpu.memory_space<vmem>>, %arg7: memref<384x384xbf16, #tpu.memory_space<vmem>>, %arg8: memref<384x16xbf16, #tpu.memory_space<vmem>>, %arg9: memref<12x16xf32, #tpu.memory_space<vmem>>, %arg10: memref<768x24xbf16, #tpu.memory_space<vmem>>, %arg11: memref<24x768xf32, #tpu.memory_space<vmem>>, %arg12: memref<12x384xbf16, #tpu.memory_space<vmem>>, %arg13: memref<8x16xf32, #tpu.memory_space<vmem>>, %arg14: memref<8x12xf32, #tpu.memory_space<vmem>>) attributes {dimension_semantics = [], scalar_prefetch = 0 : i64, scratch_operands = 0 : i64, tpu.core_type = #tpu.core_type<tc>} {
    %c0 = arith.constant 0 : index
    %c0_0 = arith.constant 0 : index
    %0 = vector.load %arg0[%c0, %c0_0] : memref<8x32xf32, #tpu.memory_space<vmem>>, vector<8x32xf32>
    %c0_1 = arith.constant 0 : index
    %c0_2 = arith.constant 0 : index
    %1 = vector.load %arg2[%c0_1, %c0_2] : memref<6x256xf32, #tpu.memory_space<vmem>>, vector<6x256xf32>
    %c0_3 = arith.constant 0 : index
    %c0_4 = arith.constant 0 : index
    %2 = vector.load %arg6[%c0_3, %c0_4] : memref<6x384xf32, #tpu.memory_space<vmem>>, vector<6x384xf32>
    %c0_5 = arith.constant 0 : index
    %c0_6 = arith.constant 0 : index
    %3 = vector.load %arg1[%c0_5, %c0_6] : memref<32x640xf32, #tpu.memory_space<vmem>>, vector<32x640xf32>
    %cst = arith.constant dense<0.000000e+00> : vector<8x640xf32>
    %4 = tpu.matmul %0, %3, %cst {dimension_numbers = #tpu.dot_dimension_numbers<[1], [0], [0], [1], [0, 0, 1, 1], [], []>} : vector<8x32xf32>, vector<32x640xf32>, vector<8x640xf32> -> vector<8x640xf32>
    %5 = vector.extract_strided_slice %4 {offsets = [0, 0], sizes = [8, 256], strides = [1, 1]} : vector<8x640xf32> to vector<8x256xf32>
    %6 = vector.extract_strided_slice %1 {offsets = [0, 0], sizes = [1, 256], strides = [1, 1]} : vector<6x256xf32> to vector<1x256xf32>
    %7 = vector.broadcast %6 : vector<1x256xf32> to vector<8x256xf32>
    %8 = arith.addf %5, %7 : vector<8x256xf32>
    %cst_7 = arith.constant 0.000000e+00 : f32
    %9 = vector.broadcast %cst_7 : f32 to vector<8x256xf32>
    %10 = arith.maximumf %8, %9 : vector<8x256xf32>
    %11 = vector.extract_strided_slice %4 {offsets = [0, 256], sizes = [8, 384], strides = [1, 1]} : vector<8x640xf32> to vector<8x384xf32>
    %12 = vector.extract_strided_slice %2 {offsets = [0, 0], sizes = [1, 384], strides = [1, 1]} : vector<6x384xf32> to vector<1x384xf32>
    %13 = vector.broadcast %12 : vector<1x384xf32> to vector<8x384xf32>
    %14 = arith.addf %11, %13 : vector<8x384xf32>
    %cst_8 = arith.constant 0.000000e+00 : f32
    %15 = vector.broadcast %cst_8 : f32 to vector<8x384xf32>
    %16 = arith.maximumf %14, %15 : vector<8x384xf32>
    %17 = vector.extract_strided_slice %1 {offsets = [1, 0], sizes = [1, 256], strides = [1, 1]} : vector<6x256xf32> to vector<1x256xf32>
    %18 = vector.extract_strided_slice %1 {offsets = [2, 0], sizes = [1, 256], strides = [1, 1]} : vector<6x256xf32> to vector<1x256xf32>
    %cst_9 = arith.constant dense<0.000000e+00> : vector<8xf32>
    %19 = vector.multi_reduction <add>, %10, %cst_9 [1] : vector<8x256xf32> to vector<8xf32>
    %20 = vector.shape_cast %19 : vector<8xf32> to vector<8x1xf32>
    %cst_10 = arith.constant 2.560000e+02 : f32
    %21 = vector.broadcast %cst_10 : f32 to vector<8x1xf32>
    %22 = arith.divf %20, %21 : vector<8x1xf32>
    %23 = vector.broadcast %22 : vector<8x1xf32> to vector<8x256xf32>
    %24 = arith.subf %10, %23 : vector<8x256xf32>
    %25 = arith.mulf %24, %24 : vector<8x256xf32>
    %cst_11 = arith.constant dense<0.000000e+00> : vector<8xf32>
    %26 = vector.multi_reduction <add>, %25, %cst_11 [1] : vector<8x256xf32> to vector<8xf32>
    %27 = vector.shape_cast %26 : vector<8xf32> to vector<8x1xf32>
    %cst_12 = arith.constant 2.560000e+02 : f32
    %28 = vector.broadcast %cst_12 : f32 to vector<8x1xf32>
    %29 = arith.divf %27, %28 : vector<8x1xf32>
    %30 = vector.broadcast %22 : vector<8x1xf32> to vector<8x256xf32>
    %31 = arith.subf %10, %30 : vector<8x256xf32>
    %cst_13 = arith.constant 9.99999974E-6 : f32
    %32 = vector.broadcast %cst_13 : f32 to vector<8x1xf32>
    %33 = arith.addf %29, %32 : vector<8x1xf32>
    %34 = math.rsqrt %33 : vector<8x1xf32>
    %35 = vector.broadcast %34 : vector<8x1xf32> to vector<8x256xf32>
    %36 = arith.mulf %31, %35 : vector<8x256xf32>
    %37 = vector.broadcast %17 : vector<1x256xf32> to vector<8x256xf32>
    %38 = arith.mulf %36, %37 : vector<8x256xf32>
    %39 = vector.broadcast %18 : vector<1x256xf32> to vector<8x256xf32>
    %40 = arith.addf %38, %39 : vector<8x256xf32>
    %cst_14 = arith.constant 0.000000e+00 : f32
    %41 = vector.broadcast %cst_14 : f32 to vector<8x256xf32>
    %42 = arith.maximumf %40, %41 : vector<8x256xf32>
    %c0_15 = arith.constant 0 : index
    %c0_16 = arith.constant 0 : index
    %43 = vector.load %arg3[%c0_15, %c0_16] : memref<256x256xf32, #tpu.memory_space<vmem>>, vector<256x256xf32>
    %cst_17 = arith.constant dense<0.000000e+00> : vector<8x256xf32>
    %44 = tpu.matmul %42, %43, %cst_17 {dimension_numbers = #tpu.dot_dimension_numbers<[1], [0], [0], [1], [0, 0, 1, 1], [], []>} : vector<8x256xf32>, vector<256x256xf32>, vector<8x256xf32> -> vector<8x256xf32>
    %45 = vector.extract_strided_slice %1 {offsets = [3, 0], sizes = [1, 256], strides = [1, 1]} : vector<6x256xf32> to vector<1x256xf32>
    %46 = vector.broadcast %45 : vector<1x256xf32> to vector<8x256xf32>
    %47 = arith.addf %44, %46 : vector<8x256xf32>
    %48 = arith.addf %47, %10 : vector<8x256xf32>
    %49 = vector.extract_strided_slice %1 {offsets = [4, 0], sizes = [1, 256], strides = [1, 1]} : vector<6x256xf32> to vector<1x256xf32>
    %50 = vector.extract_strided_slice %1 {offsets = [5, 0], sizes = [1, 256], strides = [1, 1]} : vector<6x256xf32> to vector<1x256xf32>
    %cst_18 = arith.constant dense<0.000000e+00> : vector<8xf32>
    %51 = vector.multi_reduction <add>, %48, %cst_18 [1] : vector<8x256xf32> to vector<8xf32>
    %52 = vector.shape_cast %51 : vector<8xf32> to vector<8x1xf32>
    %cst_19 = arith.constant 2.560000e+02 : f32
    %53 = vector.broadcast %cst_19 : f32 to vector<8x1xf32>
    %54 = arith.divf %52, %53 : vector<8x1xf32>
    %55 = vector.broadcast %54 : vector<8x1xf32> to vector<8x256xf32>
    %56 = arith.subf %48, %55 : vector<8x256xf32>
    %57 = arith.mulf %56, %56 : vector<8x256xf32>
    %cst_20 = arith.constant dense<0.000000e+00> : vector<8xf32>
    %58 = vector.multi_reduction <add>, %57, %cst_20 [1] : vector<8x256xf32> to vector<8xf32>
    %59 = vector.shape_cast %58 : vector<8xf32> to vector<8x1xf32>
    %cst_21 = arith.constant 2.560000e+02 : f32
    %60 = vector.broadcast %cst_21 : f32 to vector<8x1xf32>
    %61 = arith.divf %59, %60 : vector<8x1xf32>
    %62 = vector.broadcast %54 : vector<8x1xf32> to vector<8x256xf32>
    %63 = arith.subf %48, %62 : vector<8x256xf32>
    %cst_22 = arith.constant 9.99999974E-6 : f32
    %64 = vector.broadcast %cst_22 : f32 to vector<8x1xf32>
    %65 = arith.addf %61, %64 : vector<8x1xf32>
    %66 = math.rsqrt %65 : vector<8x1xf32>
    %67 = vector.broadcast %66 : vector<8x1xf32> to vector<8x256xf32>
    %68 = arith.mulf %63, %67 : vector<8x256xf32>
    %69 = vector.broadcast %49 : vector<1x256xf32> to vector<8x256xf32>
    %70 = arith.mulf %68, %69 : vector<8x256xf32>
    %71 = vector.broadcast %50 : vector<1x256xf32> to vector<8x256xf32>
    %72 = arith.addf %70, %71 : vector<8x256xf32>
    %cst_23 = arith.constant 0.000000e+00 : f32
    %73 = vector.broadcast %cst_23 : f32 to vector<8x256xf32>
    %74 = arith.maximumf %72, %73 : vector<8x256xf32>
    %c0_24 = arith.constant 0 : index
    %c0_25 = arith.constant 0 : index
    %75 = vector.load %arg4[%c0_24, %c0_25] : memref<256x12xf32, #tpu.memory_space<vmem>>, vector<256x12xf32>
    %cst_26 = arith.constant dense<0.000000e+00> : vector<8x12xf32>
    %76 = tpu.matmul %74, %75, %cst_26 {dimension_numbers = #tpu.dot_dimension_numbers<[1], [0], [0], [1], [0, 0, 1, 1], [], []>} : vector<8x256xf32>, vector<256x12xf32>, vector<8x12xf32> -> vector<8x12xf32>
    %c0_27 = arith.constant 0 : index
    %c0_28 = arith.constant 0 : index
    %77 = vector.load %arg5[%c0_27, %c0_28] : memref<1x12xf32, #tpu.memory_space<vmem>>, vector<1x12xf32>
    %78 = vector.broadcast %77 : vector<1x12xf32> to vector<8x12xf32>
    %79 = arith.addf %76, %78 : vector<8x12xf32>
    %cst_29 = arith.constant dense<0xFF800000> : vector<8xf32>
    %80 = vector.multi_reduction <maximumf>, %79, %cst_29 [1] : vector<8x12xf32> to vector<8xf32>
    %81 = vector.shape_cast %80 : vector<8xf32> to vector<8x1xf32>
    %82 = vector.broadcast %81 : vector<8x1xf32> to vector<8x12xf32>
    %83 = arith.subf %79, %82 : vector<8x12xf32>
    %84 = math.exp %83 : vector<8x12xf32>
    %cst_30 = arith.constant dense<0.000000e+00> : vector<8xf32>
    %85 = vector.multi_reduction <add>, %84, %cst_30 [1] : vector<8x12xf32> to vector<8xf32>
    %86 = vector.shape_cast %85 : vector<8xf32> to vector<8x1xf32>
    %87 = vector.broadcast %86 : vector<8x1xf32> to vector<8x12xf32>
    %88 = arith.divf %84, %87 : vector<8x12xf32>
    %c0_31 = arith.constant 0 : index
    %c0_32 = arith.constant 0 : index
    %89 = vector.load %arg14[%c0_31, %c0_32] : memref<8x12xf32, #tpu.memory_space<vmem>>, vector<8x12xf32>
    tpu.vector_store %arg14[%c0_31, %c0_32], %88 {strides = array<i32>} : memref<8x12xf32, #tpu.memory_space<vmem>>, vector<8x12xf32>,
    %90 = tpu.iota {dimensions = array<i32: 1>} : vector<8x12xi32>
    %91 = arith.sitofp %90 : vector<8x12xi32> to vector<8x12xf32>
    %cst_33 = arith.constant 0.000000e+00 : f32
    %92 = vector.broadcast %cst_33 : f32 to vector<8x12xf32>
    %cst_34 = arith.constant dense<0xFF800000> : vector<8xf32>
    %93 = vector.multi_reduction <maximumf>, %88, %cst_34 [1] : vector<8x12xf32> to vector<8xf32>
    %94 = vector.shape_cast %93 : vector<8xf32> to vector<8x1xf32>
    %95 = vector.broadcast %94 : vector<8x1xf32> to vector<8x12xf32>
    %96 = arith.cmpf oge, %88, %95 : vector<8x12xf32>
    %cst_35 = arith.constant 1.200000e+01 : f32
    %97 = vector.broadcast %cst_35 : f32 to vector<8x12xf32>
    %98 = arith.select %96, %91, %97 : vector<8x12xi1>, vector<8x12xf32>
    %cst_36 = arith.constant dense<0x7F800000> : vector<8xf32>
    %99 = vector.multi_reduction <minimumf>, %98, %cst_36 [1] : vector<8x12xf32> to vector<8xf32>
    %100 = vector.shape_cast %99 : vector<8xf32> to vector<8x1xf32>
    %101 = vector.broadcast %100 : vector<8x1xf32> to vector<8x12xf32>
    %102 = arith.cmpf oeq, %91, %101 : vector<8x12xf32>
    %103 = arith.extui %102 : vector<8x12xi1> to vector<8x12xi32>
    %104 = arith.sitofp %103 : vector<8x12xi32> to vector<8x12xf32>
    %105 = arith.maximumf %92, %104 : vector<8x12xf32>
    %cst_37 = arith.constant 0xFF800000 : f32
    %106 = vector.broadcast %cst_37 : f32 to vector<8x12xf32>
    %107 = arith.select %102, %106, %88 : vector<8x12xi1>, vector<8x12xf32>
    %cst_38 = arith.constant dense<0xFF800000> : vector<8xf32>
    %108 = vector.multi_reduction <maximumf>, %107, %cst_38 [1] : vector<8x12xf32> to vector<8xf32>
    %109 = vector.shape_cast %108 : vector<8xf32> to vector<8x1xf32>
    %110 = vector.broadcast %109 : vector<8x1xf32> to vector<8x12xf32>
    %111 = arith.cmpf oge, %107, %110 : vector<8x12xf32>
    %cst_39 = arith.constant 1.200000e+01 : f32
    %112 = vector.broadcast %cst_39 : f32 to vector<8x12xf32>
    %113 = arith.select %111, %91, %112 : vector<8x12xi1>, vector<8x12xf32>
    %cst_40 = arith.constant dense<0x7F800000> : vector<8xf32>
    %114 = vector.multi_reduction <minimumf>, %113, %cst_40 [1] : vector<8x12xf32> to vector<8xf32>
    %115 = vector.shape_cast %114 : vector<8xf32> to vector<8x1xf32>
    %116 = vector.broadcast %115 : vector<8x1xf32> to vector<8x12xf32>
    %117 = arith.cmpf oeq, %91, %116 : vector<8x12xf32>
    %118 = arith.extui %117 : vector<8x12xi1> to vector<8x12xi32>
    %119 = arith.sitofp %118 : vector<8x12xi32> to vector<8x12xf32>
    %120 = arith.maximumf %105, %119 : vector<8x12xf32>
    %cst_41 = arith.constant 0xFF800000 : f32
    %121 = vector.broadcast %cst_41 : f32 to vector<8x12xf32>
    %122 = arith.select %117, %121, %107 : vector<8x12xi1>, vector<8x12xf32>
    %cst_42 = arith.constant dense<0xFF800000> : vector<8xf32>
    %123 = vector.multi_reduction <maximumf>, %122, %cst_42 [1] : vector<8x12xf32> to vector<8xf32>
    %124 = vector.shape_cast %123 : vector<8xf32> to vector<8x1xf32>
    %125 = vector.broadcast %124 : vector<8x1xf32> to vector<8x12xf32>
    %126 = arith.cmpf oge, %122, %125 : vector<8x12xf32>
    %cst_43 = arith.constant 1.200000e+01 : f32
    %127 = vector.broadcast %cst_43 : f32 to vector<8x12xf32>
    %128 = arith.select %126, %91, %127 : vector<8x12xi1>, vector<8x12xf32>
    %cst_44 = arith.constant dense<0x7F800000> : vector<8xf32>
    %129 = vector.multi_reduction <minimumf>, %128, %cst_44 [1] : vector<8x12xf32> to vector<8xf32>
    %130 = vector.shape_cast %129 : vector<8xf32> to vector<8x1xf32>
    %131 = vector.broadcast %130 : vector<8x1xf32> to vector<8x12xf32>
    %132 = arith.cmpf oeq, %91, %131 : vector<8x12xf32>
    %133 = arith.extui %132 : vector<8x12xi1> to vector<8x12xi32>
    %134 = arith.sitofp %133 : vector<8x12xi32> to vector<8x12xf32>
    %135 = arith.maximumf %120, %134 : vector<8x12xf32>
    %cst_45 = arith.constant 0xFF800000 : f32
    %136 = vector.broadcast %cst_45 : f32 to vector<8x12xf32>
    %137 = arith.select %132, %136, %122 : vector<8x12xi1>, vector<8x12xf32>
    %cst_46 = arith.constant dense<0xFF800000> : vector<8xf32>
    %138 = vector.multi_reduction <maximumf>, %137, %cst_46 [1] : vector<8x12xf32> to vector<8xf32>
    %139 = vector.shape_cast %138 : vector<8xf32> to vector<8x1xf32>
    %140 = vector.broadcast %139 : vector<8x1xf32> to vector<8x12xf32>
    %141 = arith.cmpf oge, %137, %140 : vector<8x12xf32>
    %cst_47 = arith.constant 1.200000e+01 : f32
    %142 = vector.broadcast %cst_47 : f32 to vector<8x12xf32>
    %143 = arith.select %141, %91, %142 : vector<8x12xi1>, vector<8x12xf32>
    %cst_48 = arith.constant dense<0x7F800000> : vector<8xf32>
    %144 = vector.multi_reduction <minimumf>, %143, %cst_48 [1] : vector<8x12xf32> to vector<8xf32>
    %145 = vector.shape_cast %144 : vector<8xf32> to vector<8x1xf32>
    %146 = vector.broadcast %145 : vector<8x1xf32> to vector<8x12xf32>
    %147 = arith.cmpf oeq, %91, %146 : vector<8x12xf32>
    %148 = arith.extui %147 : vector<8x12xi1> to vector<8x12xi32>
    %149 = arith.sitofp %148 : vector<8x12xi32> to vector<8x12xf32>
    %150 = arith.maximumf %135, %149 : vector<8x12xf32>
    %151 = arith.mulf %88, %150 : vector<8x12xf32>
    %cst_49 = arith.constant dense<0.000000e+00> : vector<8xf32>
    %152 = vector.multi_reduction <add>, %151, %cst_49 [1] : vector<8x12xf32> to vector<8xf32>
    %153 = vector.shape_cast %152 : vector<8xf32> to vector<8x1xf32>
    %154 = tpu.reciprocal %153 {approx = true} : vector<8x1xf32> -> vector<8x1xf32>
    %155 = vector.broadcast %154 : vector<8x1xf32> to vector<8x12xf32>
    %156 = arith.mulf %151, %155 : vector<8x12xf32>
    %c0_50 = arith.constant 0 : index
    %c0_51 = arith.constant 0 : index
    %157 = vector.load %arg10[%c0_50, %c0_51] : memref<768x24xbf16, #tpu.memory_space<vmem>>, vector<768x24xbf16>
    %c0_52 = arith.constant 0 : index
    %c0_53 = arith.constant 0 : index
    %158 = vector.load %arg11[%c0_52, %c0_53] : memref<24x768xf32, #tpu.memory_space<vmem>>, vector<24x768xf32>
    %159 = vector.extract_strided_slice %2 {offsets = [1, 0], sizes = [1, 384], strides = [1, 1]} : vector<6x384xf32> to vector<1x384xf32>
    %160 = vector.extract_strided_slice %2 {offsets = [2, 0], sizes = [1, 384], strides = [1, 1]} : vector<6x384xf32> to vector<1x384xf32>
    %161 = arith.mulf %16, %16 : vector<8x384xf32>
    %162 = tpu.concatenate %16, %161 in 1 : vector<8x384xf32>, vector<8x384xf32> -> vector<8x768xf32>
    %163 = arith.truncf %162 : vector<8x768xf32> to vector<8x768xbf16>
    %cst_54 = arith.constant dense<0.000000e+00> : vector<8x24xf32>
    %164 = tpu.matmul %163, %157, %cst_54 {dimension_numbers = #tpu.dot_dimension_numbers<[1], [0], [0], [1], [0, 0, 1, 1], [], []>} : vector<8x768xbf16>, vector<768x24xbf16>, vector<8x24xf32> -> vector<8x24xf32>
    %cst_55 = arith.constant 3.125000e-02 : f32
    %165 = vector.broadcast %cst_55 : f32 to vector<8x24xf32>
    %166 = arith.mulf %164, %165 : vector<8x24xf32>
    %167 = vector.extract_strided_slice %166 {offsets = [0, 0], sizes = [8, 12], strides = [1, 1]} : vector<8x24xf32> to vector<8x12xf32>
    %168 = vector.extract_strided_slice %166 {offsets = [0, 12], sizes = [8, 12], strides = [1, 1]} : vector<8x24xf32> to vector<8x12xf32>
    %169 = arith.mulf %167, %167 : vector<8x12xf32>
    %170 = arith.subf %168, %169 : vector<8x12xf32>
    %cst_56 = arith.constant 0.000000e+00 : f32
    %171 = vector.broadcast %cst_56 : f32 to vector<8x12xf32>
    %172 = arith.maximumf %170, %171 : vector<8x12xf32>
    %cst_57 = arith.constant 9.99999974E-6 : f32
    %173 = vector.broadcast %cst_57 : f32 to vector<8x12xf32>
    %174 = arith.addf %172, %173 : vector<8x12xf32>
    %175 = math.rsqrt %174 : vector<8x12xf32>
    %cst_58 = arith.constant 0.000000e+00 : f32
    %176 = vector.broadcast %cst_58 : f32 to vector<8x12xf32>
    %177 = arith.subf %176, %167 : vector<8x12xf32>
    %178 = arith.mulf %177, %175 : vector<8x12xf32>
    %179 = tpu.concatenate %175, %178 in 1 : vector<8x12xf32>, vector<8x12xf32> -> vector<8x24xf32>
    %cst_59 = arith.constant dense<0.000000e+00> : vector<8x768xf32>
    %180 = tpu.matmul %179, %158, %cst_59 {dimension_numbers = #tpu.dot_dimension_numbers<[1], [0], [0], [1], [0, 0, 1, 1], [], []>} : vector<8x24xf32>, vector<24x768xf32>, vector<8x768xf32> -> vector<8x768xf32>
    %181 = vector.extract_strided_slice %180 {offsets = [0, 0], sizes = [8, 384], strides = [1, 1]} : vector<8x768xf32> to vector<8x384xf32>
    %182 = arith.mulf %16, %181 : vector<8x384xf32>
    %183 = vector.extract_strided_slice %180 {offsets = [0, 384], sizes = [8, 384], strides = [1, 1]} : vector<8x768xf32> to vector<8x384xf32>
    %184 = arith.addf %182, %183 : vector<8x384xf32>
    %185 = vector.broadcast %159 : vector<1x384xf32> to vector<8x384xf32>
    %186 = arith.mulf %184, %185 : vector<8x384xf32>
    %187 = vector.broadcast %160 : vector<1x384xf32> to vector<8x384xf32>
    %188 = arith.addf %186, %187 : vector<8x384xf32>
    %cst_60 = arith.constant 0.000000e+00 : f32
    %189 = vector.broadcast %cst_60 : f32 to vector<8x384xf32>
    %190 = arith.maximumf %188, %189 : vector<8x384xf32>
    %191 = arith.truncf %190 : vector<8x384xf32> to vector<8x384xbf16>
    %c0_61 = arith.constant 0 : index
    %c0_62 = arith.constant 0 : index
    %192 = vector.load %arg7[%c0_61, %c0_62] : memref<384x384xbf16, #tpu.memory_space<vmem>>, vector<384x384xbf16>
    %cst_63 = arith.constant dense<0.000000e+00> : vector<8x384xf32>
    %193 = tpu.matmul %191, %192, %cst_63 {dimension_numbers = #tpu.dot_dimension_numbers<[1], [0], [0], [1], [0, 0, 1, 1], [], []>} : vector<8x384xbf16>, vector<384x384xbf16>, vector<8x384xf32> -> vector<8x384xf32>
    %194 = vector.extract_strided_slice %2 {offsets = [3, 0], sizes = [1, 384], strides = [1, 1]} : vector<6x384xf32> to vector<1x384xf32>
    %195 = vector.broadcast %194 : vector<1x384xf32> to vector<8x384xf32>
    %196 = arith.addf %193, %195 : vector<8x384xf32>
    %197 = arith.addf %196, %16 : vector<8x384xf32>
    %198 = vector.extract_strided_slice %2 {offsets = [4, 0], sizes = [1, 384], strides = [1, 1]} : vector<6x384xf32> to vector<1x384xf32>
    %199 = vector.extract_strided_slice %2 {offsets = [5, 0], sizes = [1, 384], strides = [1, 1]} : vector<6x384xf32> to vector<1x384xf32>
    %200 = arith.mulf %197, %197 : vector<8x384xf32>
    %201 = tpu.concatenate %197, %200 in 1 : vector<8x384xf32>, vector<8x384xf32> -> vector<8x768xf32>
    %202 = arith.truncf %201 : vector<8x768xf32> to vector<8x768xbf16>
    %cst_64 = arith.constant dense<0.000000e+00> : vector<8x24xf32>
    %203 = tpu.matmul %202, %157, %cst_64 {dimension_numbers = #tpu.dot_dimension_numbers<[1], [0], [0], [1], [0, 0, 1, 1], [], []>} : vector<8x768xbf16>, vector<768x24xbf16>, vector<8x24xf32> -> vector<8x24xf32>
    %cst_65 = arith.constant 3.125000e-02 : f32
    %204 = vector.broadcast %cst_65 : f32 to vector<8x24xf32>
    %205 = arith.mulf %203, %204 : vector<8x24xf32>
    %206 = vector.extract_strided_slice %205 {offsets = [0, 0], sizes = [8, 12], strides = [1, 1]} : vector<8x24xf32> to vector<8x12xf32>
    %207 = vector.extract_strided_slice %205 {offsets = [0, 12], sizes = [8, 12], strides = [1, 1]} : vector<8x24xf32> to vector<8x12xf32>
    %208 = arith.mulf %206, %206 : vector<8x12xf32>
    %209 = arith.subf %207, %208 : vector<8x12xf32>
    %cst_66 = arith.constant 0.000000e+00 : f32
    %210 = vector.broadcast %cst_66 : f32 to vector<8x12xf32>
    %211 = arith.maximumf %209, %210 : vector<8x12xf32>
    %cst_67 = arith.constant 9.99999974E-6 : f32
    %212 = vector.broadcast %cst_67 : f32 to vector<8x12xf32>
    %213 = arith.addf %211, %212 : vector<8x12xf32>
    %214 = math.rsqrt %213 : vector<8x12xf32>
    %cst_68 = arith.constant 0.000000e+00 : f32
    %215 = vector.broadcast %cst_68 : f32 to vector<8x12xf32>
    %216 = arith.subf %215, %206 : vector<8x12xf32>
    %217 = arith.mulf %216, %214 : vector<8x12xf32>
    %218 = tpu.concatenate %214, %217 in 1 : vector<8x12xf32>, vector<8x12xf32> -> vector<8x24xf32>
    %cst_69 = arith.constant dense<0.000000e+00> : vector<8x768xf32>
    %219 = tpu.matmul %218, %158, %cst_69 {dimension_numbers = #tpu.dot_dimension_numbers<[1], [0], [0], [1], [0, 0, 1, 1], [], []>} : vector<8x24xf32>, vector<24x768xf32>, vector<8x768xf32> -> vector<8x768xf32>
    %220 = vector.extract_strided_slice %219 {offsets = [0, 0], sizes = [8, 384], strides = [1, 1]} : vector<8x768xf32> to vector<8x384xf32>
    %221 = arith.mulf %197, %220 : vector<8x384xf32>
    %222 = vector.extract_strided_slice %219 {offsets = [0, 384], sizes = [8, 384], strides = [1, 1]} : vector<8x768xf32> to vector<8x384xf32>
    %223 = arith.addf %221, %222 : vector<8x384xf32>
    %224 = vector.broadcast %198 : vector<1x384xf32> to vector<8x384xf32>
    %225 = arith.mulf %223, %224 : vector<8x384xf32>
    %226 = vector.broadcast %199 : vector<1x384xf32> to vector<8x384xf32>
    %227 = arith.addf %225, %226 : vector<8x384xf32>
    %228 = arith.negf %227 : vector<8x384xf32>
    %229 = math.exp %228 : vector<8x384xf32>
    %cst_70 = arith.constant 1.000000e+00 : f32
    %230 = vector.broadcast %cst_70 : f32 to vector<8x384xf32>
    %231 = arith.addf %230, %229 : vector<8x384xf32>
    %232 = arith.divf %230, %231 : vector<8x384xf32>
    %233 = arith.mulf %227, %232 : vector<8x384xf32>
    %234 = arith.truncf %156 : vector<8x12xf32> to vector<8x12xbf16>
    %c0_71 = arith.constant 0 : index
    %c0_72 = arith.constant 0 : index
    %235 = vector.load %arg12[%c0_71, %c0_72] : memref<12x384xbf16, #tpu.memory_space<vmem>>, vector<12x384xbf16>
    %cst_73 = arith.constant dense<0.000000e+00> : vector<8x384xf32>
    %236 = tpu.matmul %234, %235, %cst_73 {dimension_numbers = #tpu.dot_dimension_numbers<[1], [0], [0], [1], [0, 0, 1, 1], [], []>} : vector<8x12xbf16>, vector<12x384xbf16>, vector<8x384xf32> -> vector<8x384xf32>
    %237 = arith.mulf %233, %236 : vector<8x384xf32>
    %238 = arith.truncf %237 : vector<8x384xf32> to vector<8x384xbf16>
    %c0_74 = arith.constant 0 : index
    %c0_75 = arith.constant 0 : index
    %239 = vector.load %arg8[%c0_74, %c0_75] : memref<384x16xbf16, #tpu.memory_space<vmem>>, vector<384x16xbf16>
    %cst_76 = arith.constant dense<0.000000e+00> : vector<8x16xf32>
    %240 = tpu.matmul %238, %239, %cst_76 {dimension_numbers = #tpu.dot_dimension_numbers<[1], [0], [0], [1], [0, 0, 1, 1], [], []>} : vector<8x384xbf16>, vector<384x16xbf16>, vector<8x16xf32> -> vector<8x16xf32>
    %c0_77 = arith.constant 0 : index
    %c0_78 = arith.constant 0 : index
    %241 = vector.load %arg9[%c0_77, %c0_78] : memref<12x16xf32, #tpu.memory_space<vmem>>, vector<12x16xf32>
    %cst_79 = arith.constant dense<0.000000e+00> : vector<8x16xf32>
    %242 = tpu.matmul %156, %241, %cst_79 {dimension_numbers = #tpu.dot_dimension_numbers<[1], [0], [0], [1], [0, 0, 1, 1], [], []>} : vector<8x12xf32>, vector<12x16xf32>, vector<8x16xf32> -> vector<8x16xf32>
    %243 = arith.addf %240, %242 : vector<8x16xf32>
    %c0_80 = arith.constant 0 : index
    %c0_81 = arith.constant 0 : index
    %244 = vector.load %arg13[%c0_80, %c0_81] : memref<8x16xf32, #tpu.memory_space<vmem>>, vector<8x16xf32>
    tpu.vector_store %arg13[%c0_80, %c0_81], %243 {strides = array<i32>} : memref<8x16xf32, #tpu.memory_space<vmem>>, vector<8x16xf32>,
    return
  }
}

</mosaic_0001>

<llo_original>
// kernel: moe_forward.1
$region0: #{moe_forward.1}
  #allocation0 [shape = 'u32[]', space=smem, size = 0x4, offset = 0x4, fixed_abs, tag = 'smem constant byte address 0x4 - core index']
  #allocation1 [shape = 'u32[72,128]{1,0:T(1,128)}', space=vmem, size = 0x9000, scoped, tag = 'internal scratch']
  %s0 = inlined_call_operand.vmem [shape: f32[8,32], index: 0, kind: input, shape index: {}]
  %s1 = inlined_call_operand.vmem [shape: f32[32,640], index: 1, kind: input, shape index: {}]
  %s2 = inlined_call_operand.vmem [shape: f32[6,256], index: 2, kind: input, shape index: {}]
  %s3 = inlined_call_operand.hbm [shape: f32[256,256], index: 3, kind: input, shape index: {}]
  %s4 = inlined_call_operand.vmem [shape: f32[256,12], index: 4, kind: input, shape index: {}]
  %s5 = inlined_call_operand.vmem [shape: f32[1,12], index: 5, kind: input, shape index: {}]
  %s6 = inlined_call_operand.vmem [shape: f32[6,384], index: 6, kind: input, shape index: {}]
  %s7 = inlined_call_operand.vmem [shape: bf16[384,384], index: 7, kind: input, shape index: {}]
  %s8 = inlined_call_operand.vmem [shape: bf16[384,16], index: 8, kind: input, shape index: {}]
  %s9 = inlined_call_operand.vmem [shape: f32[12,16], index: 9, kind: input, shape index: {}]
  %s10 = inlined_call_operand.vmem [shape: bf16[768,24], index: 10, kind: input, shape index: {}]
  %s11 = inlined_call_operand.hbm [shape: f32[24,768], index: 11, kind: input, shape index: {}]
  %s12 = inlined_call_operand.vmem [shape: bf16[12,384], index: 12, kind: input, shape index: {}]
  %s13 = inlined_call_operand.hbm [shape: f32[8,16], index: 13, kind: output, shape index: {0}]
  %s14 = inlined_call_operand.vmem [shape: f32[8,12], index: 14, kind: output, shape index: {1}]
  %15 = xla_tuple %s13, %s14
  %s16 = sld [smem:[#allocation0]]
  $region78: #{moe_forward.1} parent=0
    _
  %s18 = ssub.s32 1, %s16
  %s19 = scalar_select 0, %s18, %s16
  $region1: #{moe_forward.1} parent=0
    #allocation2 [shape = 'u8[262144]{0}', space=vmem, size = 0x40000, scoped, tag = 'input window, operand 3, single buffered']
    #allocation3 [shape = 's32[1]{0}', space=sflag, size = 0x4, scoped, tag = 'scoped memory for moe_forward.1']
    #allocation4 [shape = 's32[1]{0}', space=sflag, size = 0x4, scoped, tag = 'scoped memory for moe_forward.1']
    #allocation5 [shape = 'u8[73728]{0}', space=vmem, size = 0x12000, scoped, tag = 'input window, operand 11, single buffered']
    #allocation6 [shape = 's32[1]{0}', space=sflag, size = 0x4, scoped, tag = 'scoped memory for moe_forward.1']
    #allocation7 [shape = 'u8[4096]{0}', space=vmem, size = 0x1000, scoped, tag = 'output window, operand 0, single buffered']
    %20 = vsyncpa [#allocation3], 0
    %21 = vsyncpa [#allocation6], 0
    %22 = vsyncpa [#allocation4], 0
    // Predicated region
    $region2: #{moe_forward.1} parent=1 // pred_check
      _
    $region3: #{moe_forward.1} parent=1 // pred_check_branch
      %24 = sbr.rel (0) target = $region5
    $region4: #{moe_forward.1} parent=1 // pred_region
      _
    $region5: #{moe_forward.1} parent=1 // pred_fallthru
      _
    // Predicated region
    $region6: #{moe_forward.1} parent=1 // pred_check
      _
    $region7: #{moe_forward.1} parent=1 // pred_check_branch
      %26 = sbr.rel (0) target = $region9
    $region8: #{moe_forward.1} parent=1 // pred_region
      _
    $region9: #{moe_forward.1} parent=1 // pred_fallthru
      _
    // Predicated region
    $region10: #{moe_forward.1} parent=1 // pred_check
      _
    $region11: #{moe_forward.1} parent=1 // pred_check_branch
      %28 = sbr.rel (0) target = $region13
    $region12: #{moe_forward.1} parent=1 // pred_region
      _
    $region13: #{moe_forward.1} parent=1 // pred_fallthru
      _
    // Predicated region
    $region14: #{moe_forward.1} parent=1 // pred_check
      _
    $region15: #{moe_forward.1} parent=1 // pred_check_branch
      %30 = sbr.rel (0) target = $region17
    $region16: #{moe_forward.1} parent=1 // pred_region
      %32 = vsyncadd [#allocation3], 0
      %s33 = sshll.u32 %s3, 4
      %s34 = int_to_ptr.hbm [resolvable:$true] %s33
      %s35 = sshll.u32 [#allocation2], 4
      %s36 = int_to_ptr.vmem [resolvable:$true] %s35
      %41 = dma.hbm_to_vmem [thread:$0]  %s34, 8192, %s36, [#allocation3], 256, 256, 16
    $region17: #{moe_forward.1} parent=1 // pred_fallthru
      _
    // Predicated region
    $region18: #{moe_forward.1} parent=1 // pred_check
      _
    $region19: #{moe_forward.1} parent=1 // pred_check_branch
      %43 = sbr.rel (0) target = $region21
    $region20: #{moe_forward.1} parent=1 // pred_region
      _
    $region21: #{moe_forward.1} parent=1 // pred_fallthru
      _
    // Predicated region
    $region22: #{moe_forward.1} parent=1 // pred_check
      _
    $region23: #{moe_forward.1} parent=1 // pred_check_branch
      %45 = sbr.rel (0) target = $region25
    $region24: #{moe_forward.1} parent=1 // pred_region
      _
    $region25: #{moe_forward.1} parent=1 // pred_fallthru
      _
    // Predicated region
    $region26: #{moe_forward.1} parent=1 // pred_check
      _
    $region27: #{moe_forward.1} parent=1 // pred_check_branch
      %47 = sbr.rel (0) target = $region29
    $region28: #{moe_forward.1} parent=1 // pred_region
      _
    $region29: #{moe_forward.1} parent=1 // pred_fallthru
      _
    // Predicated region
    $region30: #{moe_forward.1} parent=1 // pred_check
      _
    $region31: #{moe_forward.1} parent=1 // pred_check_branch
      %49 = sbr.rel (0) target = $region33
    $region32: #{moe_forward.1} parent=1 // pred_region
      _
    $region33: #{moe_forward.1} parent=1 // pred_fallthru
      _
    // Predicated region
    $region34: #{moe_forward.1} parent=1 // pred_check
      _
    $region35: #{moe_forward.1} parent=1 // pred_check_branch
      %51 = sbr.rel (0) target = $region37
    $region36: #{moe_forward.1} parent=1 // pred_region
      _
    $region37: #{moe_forward.1} parent=1 // pred_fallthru
      _
    // Predicated region
    $region38: #{moe_forward.1} parent=1 // pred_check
      _
    $region39: #{moe_forward.1} parent=1 // pred_check_branch
      %53 = sbr.rel (0) target = $region41
    $region40: #{moe_forward.1} parent=1 // pred_region
      _
    $region41: #{moe_forward.1} parent=1 // pred_fallthru
      _
    // Predicated region
    $region42: #{moe_forward.1} parent=1 // pred_check
      _
    $region43: #{moe_forward.1} parent=1 // pred_check_branch
      %55 = sbr.rel (0) target = $region45
    $region44: #{moe_forward.1} parent=1 // pred_region
      _
    $region45: #{moe_forward.1} parent=1 // pred_fallthru
      _
    // Predicated region
    $region46: #{moe_forward.1} parent=1 // pred_check
      _
    $region47: #{moe_forward.1} parent=1 // pred_check_branch
      %57 = sbr.rel (0) target = $region49
    $region48: #{moe_forward.1} parent=1 // pred_region
      %59 = vsyncadd [#allocation6], 0
      %s60 = sshll.u32 %s11, 4
      %s61 = int_to_ptr.hbm [resolvable:$true] %s60
      %s62 = sshll.u32 [#allocation5], 4
      %s63 = int_to_ptr.vmem [resolvable:$true] %s62
      %68 = dma.hbm_to_vmem [thread:$0]  %s61, 2304, %s63, [#allocation6], 768, 768, 48
    $region49: #{moe_forward.1} parent=1 // pred_fallthru
      _
    // Predicated region
    $region50: #{moe_forward.1} parent=1 // pred_check
      _
    $region51: #{moe_forward.1} parent=1 // pred_check_branch
      %70 = sbr.rel (0) target = $region53
    $region52: #{moe_forward.1} parent=1 // pred_region
      _
    $region53: #{moe_forward.1} parent=1 // pred_fallthru
      _
    // Predicated region
    $region54: #{moe_forward.1} parent=1 // pred_check
      _
    $region55: #{moe_forward.1} parent=1 // pred_check_branch
      %72 = sbr.rel (0) target = $region57
    $region56: #{moe_forward.1} parent=1 // pred_region
      %74 = dma.done [#allocation3], 8192
    $region57: #{moe_forward.1} parent=1 // pred_fallthru
      _
    // Predicated region
    $region58: #{moe_forward.1} parent=1 // pred_check
      _
    $region59: #{moe_forward.1} parent=1 // pred_check_branch
      %76 = sbr.rel (0) target = $region61
    $region60: #{moe_forward.1} parent=1 // pred_region
      %78 = dma.done [#allocation6], 2304
    $region61: #{moe_forward.1} parent=1 // pred_fallthru
      _
    %v80 = vld [vmem:[%s0] sm:$0xff]
    %v81 = vld [vmem:[%s2] sm:$0x3f]
    %v82 = vld [vmem:[%s2 + $0x8] sm:$0x3f]
    %v83 = vld [vmem:[%s6] sm:$0x3f]
    %v84 = vld [vmem:[%s6 + $0x8] sm:$0x3f]
    %v85 = vld [vmem:[%s6 + $0x10] sm:$0x3f]
    %v86 = vld [vmem:[%s1] sm:$0xff]
    %v87 = vld [vmem:[%s1 + $0x8] sm:$0xff]
    %v88 = vld [vmem:[%s1 + $0x10] sm:$0xff]
    %v89 = vld [vmem:[%s1 + $0x18] sm:$0xff]
    %v90 = vld [vmem:[%s1 + $0x20] sm:$0xff]
    %v91 = vld [vmem:[%s1 + $0x28] sm:$0xff]
    %v92 = vld [vmem:[%s1 + $0x30] sm:$0xff]
    %v93 = vld [vmem:[%s1 + $0x38] sm:$0xff]
    %v94 = vld [vmem:[%s1 + $0x40] sm:$0xff]
    %v95 = vld [vmem:[%s1 + $0x48] sm:$0xff]
    %v96 = vld [vmem:[%s1 + $0x50] sm:$0xff]
    %v97 = vld [vmem:[%s1 + $0x58] sm:$0xff]
    %v98 = vld [vmem:[%s1 + $0x60] sm:$0xff]
    %v99 = vld [vmem:[%s1 + $0x68] sm:$0xff]
    %v100 = vld [vmem:[%s1 + $0x70] sm:$0xff]
    %v101 = vld [vmem:[%s1 + $0x78] sm:$0xff]
    %v102 = vld [vmem:[%s1 + $0x80] sm:$0xff]
    %v103 = vld [vmem:[%s1 + $0x88] sm:$0xff]
    %v104 = vld [vmem:[%s1 + $0x90] sm:$0xff]
    %v105 = vld [vmem:[%s1 + $0x98] sm:$0xff]
    %vm106 = vcmask 261120
    %v108 = vsel %vm106, %v80, 0
    %110 = vmatpush.msra.mxu0 0.0
    %111 = vmatpush.msra.mxu0 0.0
    %112 = vmatpush.msra.mxu0 0.0
    %113 = vmatpush.msra.mxu0 0.0
    %114 = vmatpush.msra.mxu0 0.0
    %115 = vmatpush.msra.mxu0 0.0
    %116 = vmatpush.msra.mxu0 0.0
    %117 = vmatpush.msra.mxu0 0.0
    %118 = vmatpush.msra.mxu0 0.0
    %119 = vmatpush.msra.mxu0 0.0
    %120 = vmatpush.msra.mxu0 0.0
    %121 = vmatpush.msra.mxu0 0.0
    %122 = vmatpush.msra.mxu0 %v101
    %123 = vmatpush.msra.mxu0 %v96
    %124 = vmatpush.msra.mxu0 %v91
    %125 = vmatpush.msra.mxu0 %v86
    %126 = vmatmul.f32.gmra.mxu0 %v108
    %v127 = vpop.f32.mrf.mxu0
    %v128 = vadd.f32 0.0, %v127
    %129 = vdwg.mxu0
    %130 = vmatpush.msra.mxu0 0.0
    %131 = vmatpush.msra.mxu0 0.0
    %132 = vmatpush.msra.mxu0 0.0
    %133 = vmatpush.msra.mxu0 0.0
    %134 = vmatpush.msra.mxu0 0.0
    %135 = vmatpush.msra.mxu0 0.0
    %136 = vmatpush.msra.mxu0 0.0
    %137 = vmatpush.msra.mxu0 0.0
    %138 = vmatpush.msra.mxu0 0.0
    %139 = vmatpush.msra.mxu0 0.0
    %140 = vmatpush.msra.mxu0 0.0
    %141 = vmatpush.msra.mxu0 0.0
    %142 = vmatpush.msra.mxu0 %v102
    %143 = vmatpush.msra.mxu0 %v97
    %144 = vmatpush.msra.mxu0 %v92
    %145 = vmatpush.msra.mxu0 %v87
    %146 = vmatmul.f32.gmra.mxu0 %v108
    %v147 = vpop.f32.mrf.mxu0
    %v148 = vadd.f32 0.0, %v147
    %149 = vdwg.mxu0
    %150 = vmatpush.msra.mxu0 0.0
    %151 = vmatpush.msra.mxu0 0.0
    %152 = vmatpush.msra.mxu0 0.0
    %153 = vmatpush.msra.mxu0 0.0
    %154 = vmatpush.msra.mxu0 0.0
    %155 = vmatpush.msra.mxu0 0.0
    %156 = vmatpush.msra.mxu0 0.0
    %157 = vmatpush.msra.mxu0 0.0
    %158 = vmatpush.msra.mxu0 0.0
    %159 = vmatpush.msra.mxu0 0.0
    %160 = vmatpush.msra.mxu0 0.0
    %161 = vmatpush.msra.mxu0 0.0
    %162 = vmatpush.msra.mxu0 %v103
    %163 = vmatpush.msra.mxu0 %v98
    %164 = vmatpush.msra.mxu0 %v93
    %165 = vmatpush.msra.mxu0 %v88
    %166 = vmatmul.f32.gmra.mxu0 %v108
    %v167 = vpop.f32.mrf.mxu0
    %v168 = vadd.f32 0.0, %v167
    %169 = vdwg.mxu0
    %170 = vmatpush.msra.mxu0 0.0
    %171 = vmatpush.msra.mxu0 0.0
    %172 = vmatpush.msra.mxu0 0.0
    %173 = vmatpush.msra.mxu0 0.0
    %174 = vmatpush.msra.mxu0 0.0
    %175 = vmatpush.msra.mxu0 0.0
    %176 = vmatpush.msra.mxu0 0.0
    %177 = vmatpush.msra.mxu0 0.0
    %178 = vmatpush.msra.mxu0 0.0
    %179 = vmatpush.msra.mxu0 0.0
    %180 = vmatpush.msra.mxu0 0.0
    %181 = vmatpush.msra.mxu0 0.0
    %182 = vmatpush.msra.mxu0 %v104
    %183 = vmatpush.msra.mxu0 %v99
    %184 = vmatpush.msra.mxu0 %v94
    %185 = vmatpush.msra.mxu0 %v89
    %186 = vmatmul.f32.gmra.mxu0 %v108
    %v187 = vpop.f32.mrf.mxu0
    %v188 = vadd.f32 0.0, %v187
    %189 = vdwg.mxu0
    %190 = vmatpush.msra.mxu0 0.0
    %191 = vmatpush.msra.mxu0 0.0
    %192 = vmatpush.msra.mxu0 0.0
    %193 = vmatpush.msra.mxu0 0.0
    %194 = vmatpush.msra.mxu0 0.0
    %195 = vmatpush.msra.mxu0 0.0
    %196 = vmatpush.msra.mxu0 0.0
    %197 = vmatpush.msra.mxu0 0.0
    %198 = vmatpush.msra.mxu0 0.0
    %199 = vmatpush.msra.mxu0 0.0
    %200 = vmatpush.msra.mxu0 0.0
    %201 = vmatpush.msra.mxu0 0.0
    %202 = vmatpush.msra.mxu0 %v105
    %203 = vmatpush.msra.mxu0 %v100
    %204 = vmatpush.msra.mxu0 %v95
    %205 = vmatpush.msra.mxu0 %v90
    %206 = vmatmul.f32.gmra.mxu0 %v108
    %v207 = vpop.f32.mrf.mxu0
    %v208 = vadd.f32 0.0, %v207
    %209 = vdwg.mxu0
    %v210 = vperm.slane %v81, 0
    %v211 = vperm.slane %v82, 0
    %v212 = vadd.f32 %v128, %v210
    %v213 = vadd.f32 %v148, %v211
    %v214 = vmax.f32 %v212, 0.0
    %v215 = vmax.f32 %v213, 0.0
    %v216 = vperm.slane %v83, 0
    %v217 = vperm.slane %v84, 0
    %v218 = vperm.slane %v85, 0
    %v219 = vadd.f32 %v168, %v216
    %v220 = vadd.f32 %v188, %v217
    %v221 = vadd.f32 %v208, %v218
    %v222 = vmax.f32 %v219, 0.0
    %v223 = vmax.f32 %v220, 0.0
    %v224 = vmax.f32 %v221, 0.0
    %v225 = vadd.f32 %v214, %v215
    %226 = vadd.xlane.f32.xlu0 %v225
    %v227 = vpop.xlane.xlu0 %226
    %v228 = vrcp.pop 256.0
    %v229 = vmul.f32 256.0, %v228
    %v230 = vsub.f32 1.0, %v229
    %v231 = vmul.f32 %v228, %v230
    %v232 = vadd.f32 %v228, %v231
    %vm233 = vweird.f32 %v228
    %v234 = vsel %vm233, %v228, %v232
    %v235 = vmul.f32 %v227, %v234
    %v236 = vsub.f32 %v214, %v235
    %v237 = vsub.f32 %v215, %v235
    %v238 = vmul.f32 %v236, %v236
    %v239 = vmul.f32 %v237, %v237
    %v240 = vadd.f32 %v238, %v239
    %241 = vadd.xlane.f32.xlu0 %v240
    %v242 = vpop.xlane.xlu0 %241
    %v243 = vmul.f32 %v242, %v234
    %v244 = vadd.f32 %v243, 1e-05
    %v245 = vrsqrt.pop %v244
    %v246 = vmul.f32 %v245, %v244
    %v247 = vmul.f32 %v246, %v245
    %v248 = vmul.f32 0.5, %v247
    %v249 = vsub.f32 1.5, %v248
    %v250 = vmul.f32 %v245, %v249
    %vm251 = vweird.f32 %v244
    %vm252 = vweird.f32 %v245
    %vm253 = vmor %vm251, %vm252
    %v254 = vsel %vm253, %v245, %v250
    %v255 = vmul.f32 %v236, %v254
    %v256 = vmul.f32 %v237, %v254
    %v257 = vperm.slane %v81, 1
    %v258 = vperm.slane %v82, 1
    %v259 = vmul.f32 %v255, %v257
    %v260 = vmul.f32 %v256, %v258
    %v261 = vperm.slane %v81, 2
    %v262 = vperm.slane %v82, 2
    %v263 = vadd.f32 %v259, %v261
    %v264 = vadd.f32 %v260, %v262
    %v265 = vmax.f32 %v263, 0.0
    %v266 = vmax.f32 %v264, 0.0
    %v267 = vld [vmem:[#allocation2] sm:$0xff]
    %v268 = vld [vmem:[#allocation2 + $0x8] sm:$0xff]
    %v269 = vld [vmem:[#allocation2 + $0x10] sm:$0xff]
    %v270 = vld [vmem:[#allocation2 + $0x18] sm:$0xff]
    %v271 = vld [vmem:[#allocation2 + $0x20] sm:$0xff]
    %v272 = vld [vmem:[#allocation2 + $0x28] sm:$0xff]
    %v273 = vld [vmem:[#allocation2 + $0x30] sm:$0xff]
    %v274 = vld [vmem:[#allocation2 + $0x38] sm:$0xff]
    %v275 = vld [vmem:[#allocation2 + $0x40] sm:$0xff]
    %v276 = vld [vmem:[#allocation2 + $0x48] sm:$0xff]
    %v277 = vld [vmem:[#allocation2 + $0x50] sm:$0xff]
    %v278 = vld [vmem:[#allocation2 + $0x58] sm:$0xff]
    %v279 = vld [vmem:[#allocation2 + $0x60] sm:$0xff]
    %v280 = vld [vmem:[#allocation2 + $0x68] sm:$0xff]
    %v281 = vld [vmem:[#allocation2 + $0x70] sm:$0xff]
    %v282 = vld [vmem:[#allocation2 + $0x78] sm:$0xff]
    %v283 = vld [vmem:[#allocation2 + $0x80] sm:$0xff]
    %v284 = vld [vmem:[#allocation2 + $0x88] sm:$0xff]
    %v285 = vld [vmem:[#allocation2 + $0x90] sm:$0xff]
    %v286 = vld [vmem:[#allocation2 + $0x98] sm:$0xff]
    %v287 = vld [vmem:[#allocation2 + $0xa0] sm:$0xff]
    %v288 = vld [vmem:[#allocation2 + $0xa8] sm:$0xff]
    %v289 = vld [vmem:[#allocation2 + $0xb0] sm:$0xff]
    %v290 = vld [vmem:[#allocation2 + $0xb8] sm:$0xff]
    %v291 = vld [vmem:[#allocation2 + $0xc0] sm:$0xff]
    %v292 = vld [vmem:[#allocation2 + $0xc8] sm:$0xff]
    %v293 = vld [vmem:[#allocation2 + $0xd0] sm:$0xff]
    %v294 = vld [vmem:[#allocation2 + $0xd8] sm:$0xff]
    %v295 = vld [vmem:[#allocation2 + $0xe0] sm:$0xff]
    %v296 = vld [vmem:[#allocation2 + $0xe8] sm:$0xff]
    %v297 = vld [vmem:[#allocation2 + $0xf0] sm:$0xff]
    %v298 = vld [vmem:[#allocation2 + $0xf8] sm:$0xff]
    %v299 = vld [vmem:[#allocation2 + $0x100] sm:$0xff]
    %v300 = vld [vmem:[#allocation2 + $0x108] sm:$0xff]
    %v301 = vld [vmem:[#allocation2 + $0x110] sm:$0xff]
    %v302 = vld [vmem:[#allocation2 + $0x118] sm:$0xff]
    %v303 = vld [vmem:[#allocation2 + $0x120] sm:$0xff]
    %v304 = vld [vmem:[#allocation2 + $0x128] sm:$0xff]
    %v305 = vld [vmem:[#allocation2 + $0x130] sm:$0xff]
    %v306 = vld [vmem:[#allocation2 + $0x138] sm:$0xff]
    %v307 = vld [vmem:[#allocation2 + $0x140] sm:$0xff]
    %v308 = vld [vmem:[#allocation2 + $0x148] sm:$0xff]
    %v309 = vld [vmem:[#allocation2 + $0x150] sm:$0xff]
    %v310 = vld [vmem:[#allocation2 + $0x158] sm:$0xff]
    %v311 = vld [vmem:[#allocation2 + $0x160] sm:$0xff]
    %v312 = vld [vmem:[#allocation2 + $0x168] sm:$0xff]
    %v313 = vld [vmem:[#allocation2 + $0x170] sm:$0xff]
    %v314 = vld [vmem:[#allocation2 + $0x178] sm:$0xff]
    %v315 = vld [vmem:[#allocation2 + $0x180] sm:$0xff]
    %v316 = vld [vmem:[#allocation2 + $0x188] sm:$0xff]
    %v317 = vld [vmem:[#allocation2 + $0x190] sm:$0xff]
    %v318 = vld [vmem:[#allocation2 + $0x198] sm:$0xff]
    %v319 = vld [vmem:[#allocation2 + $0x1a0] sm:$0xff]
    %v320 = vld [vmem:[#allocation2 + $0x1a8] sm:$0xff]
    %v321 = vld [vmem:[#allocation2 + $0x1b0] sm:$0xff]
    %v322 = vld [vmem:[#allocation2 + $0x1b8] sm:$0xff]
    %v323 = vld [vmem:[#allocation2 + $0x1c0] sm:$0xff]
    %v324 = vld [vmem:[#allocation2 + $0x1c8] sm:$0xff]
    %v325 = vld [vmem:[#allocation2 + $0x1d0] sm:$0xff]
    %v326 = vld [vmem:[#allocation2 + $0x1d8] sm:$0xff]
    %v327 = vld [vmem:[#allocation2 + $0x1e0] sm:$0xff]
    %v328 = vld [vmem:[#allocation2 + $0x1e8] sm:$0xff]
    %v329 = vld [vmem:[#allocation2 + $0x1f0] sm:$0xff]
    %v330 = vld [vmem:[#allocation2 + $0x1f8] sm:$0xff]
    %v331 = vperm.slane %v81, 3
    %v332 = vperm.slane %v82, 3
    %333 = vmatpush.msra.mxu0 %v297
    %334 = vmatpush.msra.mxu0 %v295
    %335 = vmatpush.msra.mxu0 %v293
    %336 = vmatpush.msra.mxu0 %v291
    %337 = vmatpush.msra.mxu0 %v289
    %338 = vmatpush.msra.mxu0 %v287
    %339 = vmatpush.msra.mxu0 %v285
    %340 = vmatpush.msra.mxu0 %v283
    %341 = vmatpush.msra.mxu0 %v281
    %342 = vmatpush.msra.mxu0 %v279
    %343 = vmatpush.msra.mxu0 %v277
    %344 = vmatpush.msra.mxu0 %v275
    %345 = vmatpush.msra.mxu0 %v273
    %346 = vmatpush.msra.mxu0 %v271
    %347 = vmatpush.msra.mxu0 %v269
    %348 = vmatpush.msra.mxu0 %v267
    %349 = vmatmul.f32.gmra.mxu0 %v265
    %v350 = vpop.f32.mrf.mxu0
    %v351 = vadd.f32 %v331, %v350
    %352 = vdwg.mxu0
    %353 = vmatpush.msra.mxu0 %v329
    %354 = vmatpush.msra.mxu0 %v327
    %355 = vmatpush.msra.mxu0 %v325
    %356 = vmatpush.msra.mxu0 %v323
    %357 = vmatpush.msra.mxu0 %v321
    %358 = vmatpush.msra.mxu0 %v319
    %359 = vmatpush.msra.mxu0 %v317
    %360 = vmatpush.msra.mxu0 %v315
    %361 = vmatpush.msra.mxu0 %v313
    %362 = vmatpush.msra.mxu0 %v311
    %363 = vmatpush.msra.mxu0 %v309
    %364 = vmatpush.msra.mxu0 %v307
    %365 = vmatpush.msra.mxu0 %v305
    %366 = vmatpush.msra.mxu0 %v303
    %367 = vmatpush.msra.mxu0 %v301
    %368 = vmatpush.msra.mxu0 %v299
    %369 = vmatmul.f32.gmra.mxu0 %v266
    %v370 = vpop.f32.mrf.mxu0
    %v371 = vadd.f32 %v351, %v370
    %372 = vdwg.mxu0
    %373 = vmatpush.msra.mxu0 %v298
    %374 = vmatpush.msra.mxu0 %v296
    %375 = vmatpush.msra.mxu0 %v294
    %376 = vmatpush.msra.mxu0 %v292
    %377 = vmatpush.msra.mxu0 %v290
    %378 = vmatpush.msra.mxu0 %v288
    %379 = vmatpush.msra.mxu0 %v286
    %380 = vmatpush.msra.mxu0 %v284
    %381 = vmatpush.msra.mxu0 %v282
    %382 = vmatpush.msra.mxu0 %v280
    %383 = vmatpush.msra.mxu0 %v278
    %384 = vmatpush.msra.mxu0 %v276
    %385 = vmatpush.msra.mxu0 %v274
    %386 = vmatpush.msra.mxu0 %v272
    %387 = vmatpush.msra.mxu0 %v270
    %388 = vmatpush.msra.mxu0 %v268
    %389 = vmatmul.f32.gmra.mxu0 %v265
    %v390 = vpop.f32.mrf.mxu0
    %v391 = vadd.f32 %v332, %v390
    %392 = vdwg.mxu0
    %393 = vmatpush.msra.mxu0 %v330
    %394 = vmatpush.msra.mxu0 %v328
    %395 = vmatpush.msra.mxu0 %v326
    %396 = vmatpush.msra.mxu0 %v324
    %397 = vmatpush.msra.mxu0 %v322
    %398 = vmatpush.msra.mxu0 %v320
    %399 = vmatpush.msra.mxu0 %v318
    %400 = vmatpush.msra.mxu0 %v316
    %401 = vmatpush.msra.mxu0 %v314
    %402 = vmatpush.msra.mxu0 %v312
    %403 = vmatpush.msra.mxu0 %v310
    %404 = vmatpush.msra.mxu0 %v308
    %405 = vmatpush.msra.mxu0 %v306
    %406 = vmatpush.msra.mxu0 %v304
    %407 = vmatpush.msra.mxu0 %v302
    %408 = vmatpush.msra.mxu0 %v300
    %409 = vmatmul.f32.gmra.mxu0 %v266
    %v410 = vpop.f32.mrf.mxu0
    %v411 = vadd.f32 %v391, %v410
    %412 = vdwg.mxu0
    %v413 = vadd.f32 %v371, %v214
    %v414 = vadd.f32 %v411, %v215
    %v415 = vadd.f32 %v413, %v414
    %416 = vadd.xlane.f32.xlu0 %v415
    %v417 = vpop.xlane.xlu0 %416
    %v418 = vmul.f32 %v417, %v234
    %v419 = vsub.f32 %v413, %v418
    %v420 = vsub.f32 %v414, %v418
    %v421 = vmul.f32 %v419, %v419
    %v422 = vmul.f32 %v420, %v420
    %v423 = vadd.f32 %v421, %v422
    %424 = vadd.xlane.f32.xlu0 %v423
    %v425 = vpop.xlane.xlu0 %424
    %v426 = vmul.f32 %v425, %v234
    %v427 = vadd.f32 %v426, 1e-05
    %v428 = vrsqrt.pop %v427
    %v429 = vmul.f32 %v428, %v427
    %v430 = vmul.f32 %v429, %v428
    %v431 = vmul.f32 0.5, %v430
    %v432 = vsub.f32 1.5, %v431
    %v433 = vmul.f32 %v428, %v432
    %vm434 = vweird.f32 %v427
    %vm435 = vweird.f32 %v428
    %vm436 = vmor %vm434, %vm435
    %v437 = vsel %vm436, %v428, %v433
    %v438 = vmul.f32 %v419, %v437
    %v439 = vmul.f32 %v420, %v437
    %v440 = vperm.slane %v81, 4
    %v441 = vperm.slane %v82, 4
    %v442 = vmul.f32 %v438, %v440
    %v443 = vmul.f32 %v439, %v441
    %v444 = vperm.slane %v81, 5
    %v445 = vperm.slane %v82, 5
    %v446 = vadd.f32 %v442, %v444
    %v447 = vadd.f32 %v443, %v445
    %v448 = vmax.f32 %v446, 0.0
    %v449 = vmax.f32 %v447, 0.0
    %v450 = vld [vmem:[%s4] sm:$0xff]
    %v451 = vld [vmem:[%s4 + $0x8] sm:$0xff]
    %v452 = vld [vmem:[%s4 + $0x10] sm:$0xff]
    %v453 = vld [vmem:[%s4 + $0x18] sm:$0xff]
    %v454 = vld [vmem:[%s4 + $0x20] sm:$0xff]
    %v455 = vld [vmem:[%s4 + $0x28] sm:$0xff]
    %v456 = vld [vmem:[%s4 + $0x30] sm:$0xff]
    %v457 = vld [vmem:[%s4 + $0x38] sm:$0xff]
    %v458 = vld [vmem:[%s4 + $0x40] sm:$0xff]
    %v459 = vld [vmem:[%s4 + $0x48] sm:$0xff]
    %v460 = vld [vmem:[%s4 + $0x50] sm:$0xff]
    %v461 = vld [vmem:[%s4 + $0x58] sm:$0xff]
    %v462 = vld [vmem:[%s4 + $0x60] sm:$0xff]
    %v463 = vld [vmem:[%s4 + $0x68] sm:$0xff]
    %v464 = vld [vmem:[%s4 + $0x70] sm:$0xff]
    %v465 = vld [vmem:[%s4 + $0x78] sm:$0xff]
    %v466 = vld [vmem:[%s4 + $0x80] sm:$0xff]
    %v467 = vld [vmem:[%s4 + $0x88] sm:$0xff]
    %v468 = vld [vmem:[%s4 + $0x90] sm:$0xff]
    %v469 = vld [vmem:[%s4 + $0x98] sm:$0xff]
    %v470 = vld [vmem:[%s4 + $0xa0] sm:$0xff]
    %v471 = vld [vmem:[%s4 + $0xa8] sm:$0xff]
    %v472 = vld [vmem:[%s4 + $0xb0] sm:$0xff]
    %v473 = vld [vmem:[%s4 + $0xb8] sm:$0xff]
    %v474 = vld [vmem:[%s4 + $0xc0] sm:$0xff]
    %v475 = vld [vmem:[%s4 + $0xc8] sm:$0xff]
    %v476 = vld [vmem:[%s4 + $0xd0] sm:$0xff]
    %v477 = vld [vmem:[%s4 + $0xd8] sm:$0xff]
    %v478 = vld [vmem:[%s4 + $0xe0] sm:$0xff]
    %v479 = vld [vmem:[%s4 + $0xe8] sm:$0xff]
    %v480 = vld [vmem:[%s4 + $0xf0] sm:$0xff]
    %v481 = vld [vmem:[%s4 + $0xf8] sm:$0xff]
    %v482 = vld [vmem:[%s5] sm:$0x1]
    %v484 = vperm.slane %v482, 0
    %486 = vmatpush.msra.mxu0 %v465
    %487 = vmatpush.msra.mxu0 %v464
    %488 = vmatpush.msra.mxu0 %v463
    %489 = vmatpush.msra.mxu0 %v462
    %490 = vmatpush.msra.mxu0 %v461
    %491 = vmatpush.msra.mxu0 %v460
    %492 = vmatpush.msra.mxu0 %v459
    %493 = vmatpush.msra.mxu0 %v458
    %494 = vmatpush.msra.mxu0 %v457
    %495 = vmatpush.msra.mxu0 %v456
    %496 = vmatpush.msra.mxu0 %v455
    %497 = vmatpush.msra.mxu0 %v454
    %498 = vmatpush.msra.mxu0 %v453
    %499 = vmatpush.msra.mxu0 %v452
    %500 = vmatpush.msra.mxu0 %v451
    %501 = vmatpush.msra.mxu0 %v450
    %502 = vmatmul.f32.gmra.mxu0 %v448
    %v503 = vpop.f32.mrf.mxu0
    %v504 = vadd.f32 %v484, %v503
    %505 = vdwg.mxu0
    %506 = vmatpush.msra.mxu0 %v481
    %507 = vmatpush.msra.mxu0 %v480
    %508 = vmatpush.msra.mxu0 %v479
    %509 = vmatpush.msra.mxu0 %v478
    %510 = vmatpush.msra.mxu0 %v477
    %511 = vmatpush.msra.mxu0 %v476
    %512 = vmatpush.msra.mxu0 %v475
    %513 = vmatpush.msra.mxu0 %v474
    %514 = vmatpush.msra.mxu0 %v473
    %515 = vmatpush.msra.mxu0 %v472
    %516 = vmatpush.msra.mxu0 %v471
    %517 = vmatpush.msra.mxu0 %v470
    %518 = vmatpush.msra.mxu0 %v469
    %519 = vmatpush.msra.mxu0 %v468
    %520 = vmatpush.msra.mxu0 %v467
    %521 = vmatpush.msra.mxu0 %v466
    %522 = vmatmul.f32.gmra.mxu0 %v449
    %v523 = vpop.f32.mrf.mxu0
    %v524 = vadd.f32 %v504, %v523
    %525 = vdwg.mxu0
    %vm526 = vcmask 97280
    %v527 = vsel %vm526, %v524, -inf
    %528 = vmax.xlane.f32.xlu0 %v527
    %v529 = vpop.xlane.xlu0 %528
    %v530 = vsub.f32 %v524, %v529
    %v531 = vmul.f32 %v530, 1.442695
    %v532 = vpow.pop %v531
    %v533 = vsel %vm526, %v532, 0.0
    %534 = vadd.xlane.f32.xlu0 %v533
    %v535 = vpop.xlane.xlu0 %534
    %v536 = vrcp.pop %v535
    %v537 = vmul.f32 %v535, %v536
    %v538 = vsub.f32 1.0, %v537
    %v539 = vmul.f32 %v536, %v538
    %v540 = vadd.f32 %v536, %v539
    %vm541 = vweird.f32 %v535
    %vm542 = vweird.f32 %v536
    %vm543 = vmor %vm541, %vm542
    %v544 = vsel %vm543, %v536, %v540
    %v545 = vand.u32 2147483647, %v535
    %vm546 = vcmp.eq.f32.partialorder %v545, 8.507059e+37
    %v547 = vand.u32 %v535, 2147483648
    %v548 = vor.u32 1.1754944e-38, %v547
    %v549 = vsel %vm546, %v548, %v544
    %v550 = vmul.f32 %v532, %v549
    %551 = vst.msk [vmem:[%s14] sm:$0xff] %vm526, %v550
    %v552 = vlaneseq
    %v553 = vand.u32 %v552, 127
    %v554 = vcvt.s32.f32 %v553
    %v555 = vsel %vm526, %v550, -inf
    %556 = vmax.xlane.f32.xlu0 %v555
    %v557 = vpop.xlane.xlu0 %556
    %vm558 = vcmp.ge.f32.partialorder %v550, %v557
    %v559 = vsel %vm558, %v554, 12.0
    %v560 = vsel %vm526, %v559, inf
    %561 = vmin.xlane.f32.xlu0 %v560
    %v562 = vpop.xlane.xlu0 %561
    %vm563 = vcmp.eq.f32.partialorder %v554, %v562
    %v564 = vsel %vm563, 1, 0
    %v565 = vcvt.s32.f32 %v564
    %v566 = vmax.f32 %v565, 0.0
    %v567 = vsel %vm563, -inf, %v550
    %v568 = vsel %vm526, %v567, -inf
    %569 = vmax.xlane.f32.xlu0 %v568
    %v570 = vpop.xlane.xlu0 %569
    %vm571 = vcmp.ge.f32.partialorder %v567, %v570
    %v572 = vsel %vm571, %v554, 12.0
    %v573 = vsel %vm526, %v572, inf
    %574 = vmin.xlane.f32.xlu0 %v573
    %v575 = vpop.xlane.xlu0 %574
    %vm576 = vcmp.eq.f32.partialorder %v554, %v575
    %v577 = vsel %vm576, 1, 0
    %v578 = vcvt.s32.f32 %v577
    %v579 = vmax.f32 %v566, %v578
    %v580 = vsel %vm576, -inf, %v567
    %v581 = vsel %vm526, %v580, -inf
    %582 = vmax.xlane.f32.xlu0 %v581
    %v583 = vpop.xlane.xlu0 %582
    %vm584 = vcmp.ge.f32.partialorder %v580, %v583
    %v585 = vsel %vm584, %v554, 12.0
    %v586 = vsel %vm526, %v585, inf
    %587 = vmin.xlane.f32.xlu0 %v586
    %v588 = vpop.xlane.xlu0 %587
    %vm589 = vcmp.eq.f32.partialorder %v554, %v588
    %v590 = vsel %vm589, 1, 0
    %v591 = vcvt.s32.f32 %v590
    %v592 = vmax.f32 %v579, %v591
    %v593 = vsel %vm589, -inf, %v580
    %v594 = vsel %vm526, %v593, -inf
    %595 = vmax.xlane.f32.xlu0 %v594
    %v596 = vpop.xlane.xlu0 %595
    %vm597 = vcmp.ge.f32.partialorder %v593, %v596
    %v598 = vsel %vm597, %v554, 12.0
    %v599 = vsel %vm526, %v598, inf
    %600 = vmin.xlane.f32.xlu0 %v599
    %v601 = vpop.xlane.xlu0 %600
    %vm602 = vcmp.eq.f32.partialorder %v554, %v601
    %v603 = vsel %vm602, 1, 0
    %v604 = vcvt.s32.f32 %v603
    %v605 = vmax.f32 %v592, %v604
    %v606 = vmul.f32 %v550, %v605
    %v607 = vsel %vm526, %v606, 0.0
    %608 = vadd.xlane.f32.xlu0 %v607
    %v609 = vpop.xlane.xlu0 %608
    %v610 = vrcp.pop %v609
    %v611 = vmul.f32 %v606, %v610
    %v612 = vld [vmem:[%s10] sm:$0xf]
    %v613 = vld [vmem:[%s10 + $0x4] sm:$0xf]
    %v614 = vld [vmem:[%s10 + $0x8] sm:$0xf]
    %v615 = vld [vmem:[%s10 + $0xc] sm:$0xf]
    %v616 = vld [vmem:[%s10 + $0x10] sm:$0xf]
    %v617 = vld [vmem:[%s10 + $0x14] sm:$0xf]
    %v618 = vld [vmem:[%s10 + $0x18] sm:$0xf]
    %v619 = vld [vmem:[%s10 + $0x1c] sm:$0xf]
    %v620 = vld [vmem:[%s10 + $0x20] sm:$0xf]
    %v621 = vld [vmem:[%s10 + $0x24] sm:$0xf]
    %v622 = vld [vmem:[%s10 + $0x28] sm:$0xf]
    %v623 = vld [vmem:[%s10 + $0x2c] sm:$0xf]
    %v624 = vld [vmem:[%s10 + $0x30] sm:$0xf]
    %v625 = vld [vmem:[%s10 + $0x34] sm:$0xf]
    %v626 = vld [vmem:[%s10 + $0x38] sm:$0xf]
    %v627 = vld [vmem:[%s10 + $0x3c] sm:$0xf]
    %v628 = vld [vmem:[%s10 + $0x40] sm:$0xf]
    %v629 = vld [vmem:[%s10 + $0x44] sm:$0xf]
    %v630 = vld [vmem:[%s10 + $0x48] sm:$0xf]
    %v631 = vld [vmem:[%s10 + $0x4c] sm:$0xf]
    %v632 = vld [vmem:[%s10 + $0x50] sm:$0xf]
    %v633 = vld [vmem:[%s10 + $0x54] sm:$0xf]
    %v634 = vld [vmem:[%s10 + $0x58] sm:$0xf]
    %v635 = vld [vmem:[%s10 + $0x5c] sm:$0xf]
    %v636 = vld [vmem:[%s10 + $0x60] sm:$0xf]
    %v637 = vld [vmem:[%s10 + $0x64] sm:$0xf]
    %v638 = vld [vmem:[%s10 + $0x68] sm:$0xf]
    %v639 = vld [vmem:[%s10 + $0x6c] sm:$0xf]
    %v640 = vld [vmem:[%s10 + $0x70] sm:$0xf]
    %v641 = vld [vmem:[%s10 + $0x74] sm:$0xf]
    %v642 = vld [vmem:[%s10 + $0x78] sm:$0xf]
    %v643 = vld [vmem:[%s10 + $0x7c] sm:$0xf]
    %v644 = vld [vmem:[%s10 + $0x80] sm:$0xf]
    %v645 = vld [vmem:[%s10 + $0x84] sm:$0xf]
    %v646 = vld [vmem:[%s10 + $0x88] sm:$0xf]
    %v647 = vld [vmem:[%s10 + $0x8c] sm:$0xf]
    %v648 = vld [vmem:[%s10 + $0x90] sm:$0xf]
    %v649 = vld [vmem:[%s10 + $0x94] sm:$0xf]
    %v650 = vld [vmem:[%s10 + $0x98] sm:$0xf]
    %v651 = vld [vmem:[%s10 + $0x9c] sm:$0xf]
    %v652 = vld [vmem:[%s10 + $0xa0] sm:$0xf]
    %v653 = vld [vmem:[%s10 + $0xa4] sm:$0xf]
    %v654 = vld [vmem:[%s10 + $0xa8] sm:$0xf]
    %v655 = vld [vmem:[%s10 + $0xac] sm:$0xf]
    %v656 = vld [vmem:[%s10 + $0xb0] sm:$0xf]
    %v657 = vld [vmem:[%s10 + $0xb4] sm:$0xf]
    %v658 = vld [vmem:[%s10 + $0xb8] sm:$0xf]
    %v659 = vld [vmem:[%s10 + $0xbc] sm:$0xf]
    %v660 = vld [vmem:[%s10 + $0xc0] sm:$0xf]
    %v661 = vld [vmem:[%s10 + $0xc4] sm:$0xf]
    %v662 = vld [vmem:[%s10 + $0xc8] sm:$0xf]
    %v663 = vld [vmem:[%s10 + $0xcc] sm:$0xf]
    %v664 = vld [vmem:[%s10 + $0xd0] sm:$0xf]
    %v665 = vld [vmem:[%s10 + $0xd4] sm:$0xf]
    %v666 = vld [vmem:[%s10 + $0xd8] sm:$0xf]
    %v667 = vld [vmem:[%s10 + $0xdc] sm:$0xf]
    %v668 = vld [vmem:[%s10 + $0xe0] sm:$0xf]
    %v669 = vld [vmem:[%s10 + $0xe4] sm:$0xf]
    %v670 = vld [vmem:[%s10 + $0xe8] sm:$0xf]
    %v671 = vld [vmem:[%s10 + $0xec] sm:$0xf]
    %v672 = vld [vmem:[%s10 + $0xf0] sm:$0xf]
    %v673 = vld [vmem:[%s10 + $0xf4] sm:$0xf]
    %v674 = vld [vmem:[%s10 + $0xf8] sm:$0xf]
    %v675 = vld [vmem:[%s10 + $0xfc] sm:$0xf]
    %v676 = vld [vmem:[%s10 + $0x100] sm:$0xf]
    %v677 = vld [vmem:[%s10 + $0x104] sm:$0xf]
    %v678 = vld [vmem:[%s10 + $0x108] sm:$0xf]
    %v679 = vld [vmem:[%s10 + $0x10c] sm:$0xf]
    %v680 = vld [vmem:[%s10 + $0x110] sm:$0xf]
    %v681 = vld [vmem:[%s10 + $0x114] sm:$0xf]
    %v682 = vld [vmem:[%s10 + $0x118] sm:$0xf]
    %v683 = vld [vmem:[%s10 + $0x11c] sm:$0xf]
    %v684 = vld [vmem:[%s10 + $0x120] sm:$0xf]
    %v685 = vld [vmem:[%s10 + $0x124] sm:$0xf]
    %v686 = vld [vmem:[%s10 + $0x128] sm:$0xf]
    %v687 = vld [vmem:[%s10 + $0x12c] sm:$0xf]
    %v688 = vld [vmem:[%s10 + $0x130] sm:$0xf]
    %v689 = vld [vmem:[%s10 + $0x134] sm:$0xf]
    %v690 = vld [vmem:[%s10 + $0x138] sm:$0xf]
    %v691 = vld [vmem:[%s10 + $0x13c] sm:$0xf]
    %v692 = vld [vmem:[%s10 + $0x140] sm:$0xf]
    %v693 = vld [vmem:[%s10 + $0x144] sm:$0xf]
    %v694 = vld [vmem:[%s10 + $0x148] sm:$0xf]
    %v695 = vld [vmem:[%s10 + $0x14c] sm:$0xf]
    %v696 = vld [vmem:[%s10 + $0x150] sm:$0xf]
    %v697 = vld [vmem:[%s10 + $0x154] sm:$0xf]
    %v698 = vld [vmem:[%s10 + $0x158] sm:$0xf]
    %v699 = vld [vmem:[%s10 + $0x15c] sm:$0xf]
    %v700 = vld [vmem:[%s10 + $0x160] sm:$0xf]
    %v701 = vld [vmem:[%s10 + $0x164] sm:$0xf]
    %v702 = vld [vmem:[%s10 + $0x168] sm:$0xf]
    %v703 = vld [vmem:[%s10 + $0x16c] sm:$0xf]
    %v704 = vld [vmem:[%s10 + $0x170] sm:$0xf]
    %v705 = vld [vmem:[%s10 + $0x174] sm:$0xf]
    %v706 = vld [vmem:[%s10 + $0x178] sm:$0xf]
    %v707 = vld [vmem:[%s10 + $0x17c] sm:$0xf]
    %v708 = vld [vmem:[#allocation5] sm:$0xff]
    %v709 = vld [vmem:[#allocation5 + $0x8] sm:$0xff]
    %v710 = vld [vmem:[#allocation5 + $0x10] sm:$0xff]
    %v711 = vld [vmem:[#allocation5 + $0x18] sm:$0xff]
    %v712 = vld [vmem:[#allocation5 + $0x20] sm:$0xff]
    %v713 = vld [vmem:[#allocation5 + $0x28] sm:$0xff]
    %v714 = vld [vmem:[#allocation5 + $0x30] sm:$0xff]
    %v715 = vld [vmem:[#allocation5 + $0x38] sm:$0xff]
    %v716 = vld [vmem:[#allocation5 + $0x40] sm:$0xff]
    %v717 = vld [vmem:[#allocation5 + $0x48] sm:$0xff]
    %v718 = vld [vmem:[#allocation5 + $0x50] sm:$0xff]
    %v719 = vld [vmem:[#allocation5 + $0x58] sm:$0xff]
    %v720 = vld [vmem:[#allocation5 + $0x60] sm:$0xff]
    %v721 = vld [vmem:[#allocation5 + $0x68] sm:$0xff]
    %v722 = vld [vmem:[#allocation5 + $0x70] sm:$0xff]
    %v723 = vld [vmem:[#allocation5 + $0x78] sm:$0xff]
    %v724 = vld [vmem:[#allocation5 + $0x80] sm:$0xff]
    %v725 = vld [vmem:[#allocation5 + $0x88] sm:$0xff]
    %v726 = vmul.f32 %v222, %v222
    %v727 = vmul.f32 %v223, %v223
    %v728 = vmul.f32 %v224, %v224
    %v729 = vpack.c.bf16 %v222, %v222
    %v730 = vpack.c.bf16 %v223, %v223
    %v731 = vpack.c.bf16 %v224, %v224
    %v732 = vpack.c.bf16 %v726, %v726
    %v733 = vpack.c.bf16 %v727, %v727
    %v734 = vpack.c.bf16 %v728, %v728
    %v831 = vunpack.c.l.b16 %v612
    %v832 = vunpack.c.l.b16 %v613
    %v833 = vunpack.c.l.b16 %v614
    %v834 = vunpack.c.l.b16 %v615
    %v835 = vunpack.c.l.b16 %v616
    %v836 = vunpack.c.l.b16 %v617
    %v837 = vunpack.c.l.b16 %v618
    %v838 = vunpack.c.l.b16 %v619
    %v839 = vunpack.c.l.b16 %v620
    %v840 = vunpack.c.l.b16 %v621
    %v841 = vunpack.c.l.b16 %v622
    %v842 = vunpack.c.l.b16 %v623
    %v843 = vunpack.c.l.b16 %v624
    %v844 = vunpack.c.l.b16 %v625
    %v845 = vunpack.c.l.b16 %v626
    %v846 = vunpack.c.l.b16 %v627
    %v847 = vunpack.c.l.b16 %v628
    %v848 = vunpack.c.l.b16 %v629
    %v849 = vunpack.c.l.b16 %v630
    %v850 = vunpack.c.l.b16 %v631
    %v851 = vunpack.c.l.b16 %v632
    %v852 = vunpack.c.l.b16 %v633
    %v853 = vunpack.c.l.b16 %v634
    %v854 = vunpack.c.l.b16 %v635
    %v855 = vunpack.c.l.b16 %v636
    %v856 = vunpack.c.l.b16 %v637
    %v857 = vunpack.c.l.b16 %v638
    %v858 = vunpack.c.l.b16 %v639
    %v859 = vunpack.c.l.b16 %v640
    %v860 = vunpack.c.l.b16 %v641
    %v861 = vunpack.c.l.b16 %v642
    %v862 = vunpack.c.l.b16 %v643
    %v863 = vunpack.c.l.b16 %v644
    %v864 = vunpack.c.l.b16 %v645
    %v865 = vunpack.c.l.b16 %v646
    %v866 = vunpack.c.l.b16 %v647
    %v867 = vunpack.c.l.b16 %v648
    %v868 = vunpack.c.l.b16 %v649
    %v869 = vunpack.c.l.b16 %v650
    %v870 = vunpack.c.l.b16 %v651
    %v871 = vunpack.c.l.b16 %v652
    %v872 = vunpack.c.l.b16 %v653
    %v873 = vunpack.c.l.b16 %v654
    %v874 = vunpack.c.l.b16 %v655
    %v875 = vunpack.c.l.b16 %v656
    %v876 = vunpack.c.l.b16 %v657
    %v877 = vunpack.c.l.b16 %v658
    %v878 = vunpack.c.l.b16 %v659
    %v879 = vunpack.c.l.b16 %v660
    %v880 = vunpack.c.l.b16 %v661
    %v881 = vunpack.c.l.b16 %v662
    %v882 = vunpack.c.l.b16 %v663
    %v883 = vunpack.c.l.b16 %v664
    %v884 = vunpack.c.l.b16 %v665
    %v885 = vunpack.c.l.b16 %v666
    %v886 = vunpack.c.l.b16 %v667
    %v887 = vunpack.c.l.b16 %v668
    %v888 = vunpack.c.l.b16 %v669
    %v889 = vunpack.c.l.b16 %v670
    %v890 = vunpack.c.l.b16 %v671
    %v891 = vunpack.c.l.b16 %v672
    %v892 = vunpack.c.l.b16 %v673
    %v893 = vunpack.c.l.b16 %v674
    %v894 = vunpack.c.l.b16 %v675
    %v895 = vunpack.c.l.b16 %v676
    %v896 = vunpack.c.l.b16 %v677
    %v897 = vunpack.c.l.b16 %v678
    %v898 = vunpack.c.l.b16 %v679
    %v899 = vunpack.c.l.b16 %v680
    %v900 = vunpack.c.l.b16 %v681
    %v901 = vunpack.c.l.b16 %v682
    %v902 = vunpack.c.l.b16 %v683
    %v903 = vunpack.c.l.b16 %v684
    %v904 = vunpack.c.l.b16 %v685
    %v905 = vunpack.c.l.b16 %v686
    %v906 = vunpack.c.l.b16 %v687
    %v907 = vunpack.c.l.b16 %v688
    %v908 = vunpack.c.l.b16 %v689
    %v909 = vunpack.c.l.b16 %v690
    %v910 = vunpack.c.l.b16 %v691
    %v911 = vunpack.c.l.b16 %v692
    %v912 = vunpack.c.l.b16 %v693
    %v913 = vunpack.c.l.b16 %v694
    %v914 = vunpack.c.l.b16 %v695
    %v915 = vunpack.c.l.b16 %v696
    %v916 = vunpack.c.l.b16 %v697
    %v917 = vunpack.c.l.b16 %v698
    %v918 = vunpack.c.l.b16 %v699
    %v919 = vunpack.c.l.b16 %v700
    %v920 = vunpack.c.l.b16 %v701
    %v921 = vunpack.c.l.b16 %v702
    %v922 = vunpack.c.l.b16 %v703
    %v923 = vunpack.c.l.b16 %v704
    %v924 = vunpack.c.l.b16 %v705
    %v925 = vunpack.c.l.b16 %v706
    %v926 = vunpack.c.l.b16 %v707
    %v927 = vpack.c.b16 %v832, %v831
    %v928 = vpack.c.b16 %v834, %v833
    %v929 = vpack.c.b16 %v836, %v835
    %v930 = vpack.c.b16 %v838, %v837
    %v931 = vpack.c.b16 %v840, %v839
    %v932 = vpack.c.b16 %v842, %v841
    %v933 = vpack.c.b16 %v844, %v843
    %v934 = vpack.c.b16 %v846, %v845
    %v935 = vpack.c.b16 %v848, %v847
    %v936 = vpack.c.b16 %v850, %v849
    %v937 = vpack.c.b16 %v852, %v851
    %v938 = vpack.c.b16 %v854, %v853
    %v939 = vpack.c.b16 %v856, %v855
    %v940 = vpack.c.b16 %v858, %v857
    %v941 = vpack.c.b16 %v860, %v859
    %v942 = vpack.c.b16 %v862, %v861
    %v943 = vpack.c.b16 %v864, %v863
    %v944 = vpack.c.b16 %v866, %v865
    %v945 = vpack.c.b16 %v868, %v867
    %v946 = vpack.c.b16 %v870, %v869
    %v947 = vpack.c.b16 %v872, %v871
    %v948 = vpack.c.b16 %v874, %v873
    %v949 = vpack.c.b16 %v876, %v875
    %v950 = vpack.c.b16 %v878, %v877
    %v951 = vpack.c.b16 %v880, %v879
    %v952 = vpack.c.b16 %v882, %v881
    %v953 = vpack.c.b16 %v884, %v883
    %v954 = vpack.c.b16 %v886, %v885
    %v955 = vpack.c.b16 %v888, %v887
    %v956 = vpack.c.b16 %v890, %v889
    %v957 = vpack.c.b16 %v892, %v891
    %v958 = vpack.c.b16 %v894, %v893
    %v959 = vpack.c.b16 %v896, %v895
    %v960 = vpack.c.b16 %v898, %v897
    %v961 = vpack.c.b16 %v900, %v899
    %v962 = vpack.c.b16 %v902, %v901
    %v963 = vpack.c.b16 %v904, %v903
    %v964 = vpack.c.b16 %v906, %v905
    %v965 = vpack.c.b16 %v908, %v907
    %v966 = vpack.c.b16 %v910, %v909
    %v967 = vpack.c.b16 %v912, %v911
    %v968 = vpack.c.b16 %v914, %v913
    %v969 = vpack.c.b16 %v916, %v915
    %v970 = vpack.c.b16 %v918, %v917
    %v971 = vpack.c.b16 %v920, %v919
    %v972 = vpack.c.b16 %v922, %v921
    %v973 = vpack.c.b16 %v924, %v923
    %v974 = vpack.c.b16 %v926, %v925
    %1023 = vmatpush.bf16.msra.mxu0 %v934
    %1024 = vmatpush.bf16.msra.mxu0 %v933
    %1025 = vmatpush.bf16.msra.mxu0 %v932
    %1026 = vmatpush.bf16.msra.mxu0 %v931
    %1027 = vmatpush.bf16.msra.mxu0 %v930
    %1028 = vmatpush.bf16.msra.mxu0 %v929
    %1029 = vmatpush.bf16.msra.mxu0 %v928
    %1030 = vmatpush.bf16.msra.mxu0 %v927
    %1031 = vmatmul.bf16.gmra.mxu0 %v729
    %v1032 = vpop.f32.mrf.mxu0
    %v1033 = vadd.f32 0.0, %v1032
    %v1034 = vpop.f32.mrf.mxu0
    %1035 = vdwg.mxu0
    %1036 = vmatpush.bf16.msra.mxu0 %v942
    %1037 = vmatpush.bf16.msra.mxu0 %v941
    %1038 = vmatpush.bf16.msra.mxu0 %v940
    %1039 = vmatpush.bf16.msra.mxu0 %v939
    %1040 = vmatpush.bf16.msra.mxu0 %v938
    %1041 = vmatpush.bf16.msra.mxu0 %v937
    %1042 = vmatpush.bf16.msra.mxu0 %v936
    %1043 = vmatpush.bf16.msra.mxu0 %v935
    %1044 = vmatmul.bf16.gmra.mxu0 %v730
    %v1045 = vpop.f32.mrf.mxu0
    %v1046 = vadd.f32 %v1033, %v1045
    %v1047 = vpop.f32.mrf.mxu0
    %1048 = vdwg.mxu0
    %1049 = vmatpush.bf16.msra.mxu0 %v950
    %1050 = vmatpush.bf16.msra.mxu0 %v949
    %1051 = vmatpush.bf16.msra.mxu0 %v948
    %1052 = vmatpush.bf16.msra.mxu0 %v947
    %1053 = vmatpush.bf16.msra.mxu0 %v946
    %1054 = vmatpush.bf16.msra.mxu0 %v945
    %1055 = vmatpush.bf16.msra.mxu0 %v944
    %1056 = vmatpush.bf16.msra.mxu0 %v943
    %1057 = vmatmul.bf16.gmra.mxu0 %v731
    %v1058 = vpop.f32.mrf.mxu0
    %v1059 = vadd.f32 %v1046, %v1058
    %v1060 = vpop.f32.mrf.mxu0
    %1061 = vdwg.mxu0
    %1062 = vmatpush.bf16.msra.mxu0 %v958
    %1063 = vmatpush.bf16.msra.mxu0 %v957
    %1064 = vmatpush.bf16.msra.mxu0 %v956
    %1065 = vmatpush.bf16.msra.mxu0 %v955
    %1066 = vmatpush.bf16.msra.mxu0 %v954
    %1067 = vmatpush.bf16.msra.mxu0 %v953
    %1068 = vmatpush.bf16.msra.mxu0 %v952
    %1069 = vmatpush.bf16.msra.mxu0 %v951
    %1070 = vmatmul.bf16.gmra.mxu0 %v732
    %v1071 = vpop.f32.mrf.mxu0
    %v1072 = vadd.f32 %v1059, %v1071
    %v1073 = vpop.f32.mrf.mxu0
    %1074 = vdwg.mxu0
    %1075 = vmatpush.bf16.msra.mxu0 %v966
    %1076 = vmatpush.bf16.msra.mxu0 %v965
    %1077 = vmatpush.bf16.msra.mxu0 %v964
    %1078 = vmatpush.bf16.msra.mxu0 %v963
    %1079 = vmatpush.bf16.msra.mxu0 %v962
    %1080 = vmatpush.bf16.msra.mxu0 %v961
    %1081 = vmatpush.bf16.msra.mxu0 %v960
    %1082 = vmatpush.bf16.msra.mxu0 %v959
    %1083 = vmatmul.bf16.gmra.mxu0 %v733
    %v1084 = vpop.f32.mrf.mxu0
    %v1085 = vadd.f32 %v1072, %v1084
    %v1086 = vpop.f32.mrf.mxu0
    %1087 = vdwg.mxu0
    %1088 = vmatpush.bf16.msra.mxu0 %v974
    %1089 = vmatpush.bf16.msra.mxu0 %v973
    %1090 = vmatpush.bf16.msra.mxu0 %v972
    %1091 = vmatpush.bf16.msra.mxu0 %v971
    %1092 = vmatpush.bf16.msra.mxu0 %v970
    %1093 = vmatpush.bf16.msra.mxu0 %v969
    %1094 = vmatpush.bf16.msra.mxu0 %v968
    %1095 = vmatpush.bf16.msra.mxu0 %v967
    %1096 = vmatmul.bf16.gmra.mxu0 %v734
    %v1097 = vpop.f32.mrf.mxu0
    %v1098 = vadd.f32 %v1085, %v1097
    %v1099 = vpop.f32.mrf.mxu0
    %1100 = vdwg.mxu0
    %v1101 = vmul.f32 %v1098, 0.03125
    %v1102 = vmul.f32 %v1101, %v1101
    %1104 = vrot.lane.b32.xlu0 %v1102, 12
    %v1105 = vpop.permute.xlu0 %1104
    %v1107 = vsub.f32 %v1101, %v1105
    %v1108 = vmax.f32 %v1107, 0.0
    %v1109 = vadd.f32 %v1108, 1e-05
    %v1110 = vrsqrt.pop %v1109
    %v1111 = vmul.f32 %v1110, %v1109
    %v1112 = vmul.f32 %v1111, %v1110
    %v1113 = vmul.f32 0.5, %v1112
    %v1114 = vsub.f32 1.5, %v1113
    %v1115 = vmul.f32 %v1110, %v1114
    %vm1116 = vweird.f32 %v1109
    %vm1117 = vweird.f32 %v1110
    %vm1118 = vmor %vm1116, %vm1117
    %v1119 = vsel %vm1118, %v1110, %v1115
    %v1120 = vsub.f32 0.0, %v1101
    %1122 = vrot.lane.b32.xlu0 %v1119, 116
    %v1123 = vpop.permute.xlu0 %1122
    %v1125 = vmul.f32 %v1120, %v1123
    %1127 = vrot.lane.b32.xlu0 %v1125, 12
    %v1128 = vpop.permute.xlu0 %1127
    %v1130 = vsel %vm526, %v1123, %v1128
    %vm1131 = vcmask 195584
    %v1133 = vsel %vm1131, %v1130, 0
    %1135 = vmatpush.msra.mxu0 0.0
    %1136 = vmatpush.msra.mxu0 0.0
    %1137 = vmatpush.msra.mxu0 0.0
    %1138 = vmatpush.msra.mxu0 0.0
    %1139 = vmatpush.msra.mxu0 0.0
    %1140 = vmatpush.msra.mxu0 0.0
    %1141 = vmatpush.msra.mxu0 0.0
    %1142 = vmatpush.msra.mxu0 0.0
    %1143 = vmatpush.msra.mxu0 0.0
    %1144 = vmatpush.msra.mxu0 0.0
    %1145 = vmatpush.msra.mxu0 0.0
    %1146 = vmatpush.msra.mxu0 0.0
    %1147 = vmatpush.msra.mxu0 0.0
    %1148 = vmatpush.msra.mxu0 %v720
    %1149 = vmatpush.msra.mxu0 %v714
    %1150 = vmatpush.msra.mxu0 %v708
    %1151 = vmatmul.f32.gmra.mxu0 %v1133
    %v1152 = vpop.f32.mrf.mxu0
    %v1153 = vadd.f32 0.0, %v1152
    %1154 = vdwg.mxu0
    %1155 = vmatpush.msra.mxu0 0.0
    %1156 = vmatpush.msra.mxu0 0.0
    %1157 = vmatpush.msra.mxu0 0.0
    %1158 = vmatpush.msra.mxu0 0.0
    %1159 = vmatpush.msra.mxu0 0.0
    %1160 = vmatpush.msra.mxu0 0.0
    %1161 = vmatpush.msra.mxu0 0.0
    %1162 = vmatpush.msra.mxu0 0.0
    %1163 = vmatpush.msra.mxu0 0.0
    %1164 = vmatpush.msra.mxu0 0.0
    %1165 = vmatpush.msra.mxu0 0.0
    %1166 = vmatpush.msra.mxu0 0.0
    %1167 = vmatpush.msra.mxu0 0.0
    %1168 = vmatpush.msra.mxu0 %v721
    %1169 = vmatpush.msra.mxu0 %v715
    %1170 = vmatpush.msra.mxu0 %v709
    %1171 = vmatmul.f32.gmra.mxu0 %v1133
    %v1172 = vpop.f32.mrf.mxu0
    %v1173 = vadd.f32 0.0, %v1172
    %1174 = vdwg.mxu0
    %1175 = vmatpush.msra.mxu0 0.0
    %1176 = vmatpush.msra.mxu0 0.0
    %1177 = vmatpush.msra.mxu0 0.0
    %1178 = vmatpush.msra.mxu0 0.0
    %1179 = vmatpush.msra.mxu0 0.0
    %1180 = vmatpush.msra.mxu0 0.0
    %1181 = vmatpush.msra.mxu0 0.0
    %1182 = vmatpush.msra.mxu0 0.0
    %1183 = vmatpush.msra.mxu0 0.0
    %1184 = vmatpush.msra.mxu0 0.0
    %1185 = vmatpush.msra.mxu0 0.0
    %1186 = vmatpush.msra.mxu0 0.0
    %1187 = vmatpush.msra.mxu0 0.0
    %1188 = vmatpush.msra.mxu0 %v722
    %1189 = vmatpush.msra.mxu0 %v716
    %1190 = vmatpush.msra.mxu0 %v710
    %1191 = vmatmul.f32.gmra.mxu0 %v1133
    %v1192 = vpop.f32.mrf.mxu0
    %v1193 = vadd.f32 0.0, %v1192
    %1194 = vdwg.mxu0
    %1195 = vmatpush.msra.mxu0 0.0
    %1196 = vmatpush.msra.mxu0 0.0
    %1197 = vmatpush.msra.mxu0 0.0
    %1198 = vmatpush.msra.mxu0 0.0
    %1199 = vmatpush.msra.mxu0 0.0
    %1200 = vmatpush.msra.mxu0 0.0
    %1201 = vmatpush.msra.mxu0 0.0
    %1202 = vmatpush.msra.mxu0 0.0
    %1203 = vmatpush.msra.mxu0 0.0
    %1204 = vmatpush.msra.mxu0 0.0
    %1205 = vmatpush.msra.mxu0 0.0
    %1206 = vmatpush.msra.mxu0 0.0
    %1207 = vmatpush.msra.mxu0 0.0
    %1208 = vmatpush.msra.mxu0 %v723
    %1209 = vmatpush.msra.mxu0 %v717
    %1210 = vmatpush.msra.mxu0 %v711
    %1211 = vmatmul.f32.gmra.mxu0 %v1133
    %v1212 = vpop.f32.mrf.mxu0
    %v1213 = vadd.f32 0.0, %v1212
    %1214 = vdwg.mxu0
    %1215 = vmatpush.msra.mxu0 0.0
    %1216 = vmatpush.msra.mxu0 0.0
    %1217 = vmatpush.msra.mxu0 0.0
    %1218 = vmatpush.msra.mxu0 0.0
    %1219 = vmatpush.msra.mxu0 0.0
    %1220 = vmatpush.msra.mxu0 0.0
    %1221 = vmatpush.msra.mxu0 0.0
    %1222 = vmatpush.msra.mxu0 0.0
    %1223 = vmatpush.msra.mxu0 0.0
    %1224 = vmatpush.msra.mxu0 0.0
    %1225 = vmatpush.msra.mxu0 0.0
    %1226 = vmatpush.msra.mxu0 0.0
    %1227 = vmatpush.msra.mxu0 0.0
    %1228 = vmatpush.msra.mxu0 %v724
    %1229 = vmatpush.msra.mxu0 %v718
    %1230 = vmatpush.msra.mxu0 %v712
    %1231 = vmatmul.f32.gmra.mxu0 %v1133
    %v1232 = vpop.f32.mrf.mxu0
    %v1233 = vadd.f32 0.0, %v1232
    %1234 = vdwg.mxu0
    %1235 = vmatpush.msra.mxu0 0.0
    %1236 = vmatpush.msra.mxu0 0.0
    %1237 = vmatpush.msra.mxu0 0.0
    %1238 = vmatpush.msra.mxu0 0.0
    %1239 = vmatpush.msra.mxu0 0.0
    %1240 = vmatpush.msra.mxu0 0.0
    %1241 = vmatpush.msra.mxu0 0.0
    %1242 = vmatpush.msra.mxu0 0.0
    %1243 = vmatpush.msra.mxu0 0.0
    %1244 = vmatpush.msra.mxu0 0.0
    %1245 = vmatpush.msra.mxu0 0.0
    %1246 = vmatpush.msra.mxu0 0.0
    %1247 = vmatpush.msra.mxu0 0.0
    %1248 = vmatpush.msra.mxu0 %v725
    %1249 = vmatpush.msra.mxu0 %v719
    %1250 = vmatpush.msra.mxu0 %v713
    %1251 = vmatmul.f32.gmra.mxu0 %v1133
    %v1252 = vpop.f32.mrf.mxu0
    %v1253 = vadd.f32 0.0, %v1252
    %1254 = vdwg.mxu0
    %v1255 = vmul.f32 %v222, %v1153
    %v1256 = vmul.f32 %v223, %v1173
    %v1257 = vmul.f32 %v224, %v1193
    %v1258 = vadd.f32 %v1255, %v1213
    %v1259 = vadd.f32 %v1256, %v1233
    %v1260 = vadd.f32 %v1257, %v1253
    %v1261 = vperm.slane %v83, 1
    %v1262 = vperm.slane %v84, 1
    %v1263 = vperm.slane %v85, 1
    %v1264 = vmul.f32 %v1258, %v1261
    %v1265 = vmul.f32 %v1259, %v1262
    %v1266 = vmul.f32 %v1260, %v1263
    %v1267 = vperm.slane %v83, 2
    %v1268 = vperm.slane %v84, 2
    %v1269 = vperm.slane %v85, 2
    %v1270 = vadd.f32 %v1264, %v1267
    %v1271 = vadd.f32 %v1265, %v1268
    %v1272 = vadd.f32 %v1266, %v1269
    %v1273 = vmax.f32 %v1270, 0.0
    %v1274 = vmax.f32 %v1271, 0.0
    %v1275 = vmax.f32 %v1272, 0.0
    %v1276 = vpack.c.bf16 %v1273, %v1273
    %v1277 = vpack.c.bf16 %v1274, %v1274
    %v1278 = vpack.c.bf16 %v1275, %v1275
    %v1279 = vld [vmem:[%s7] sm:$0xff]
    %v1280 = vld [vmem:[%s7 + $0x8] sm:$0xf]
    %v1281 = vld [vmem:[%s7 + $0xc] sm:$0xff]
    %v1282 = vld [vmem:[%s7 + $0x14] sm:$0xf]
    %v1283 = vld [vmem:[%s7 + $0x18] sm:$0xff]
    %v1284 = vld [vmem:[%s7 + $0x20] sm:$0xf]
    %v1285 = vld [vmem:[%s7 + $0x24] sm:$0xff]
    %v1286 = vld [vmem:[%s7 + $0x2c] sm:$0xf]
    %v1287 = vld [vmem:[%s7 + $0x30] sm:$0xff]
    %v1288 = vld [vmem:[%s7 + $0x38] sm:$0xf]
    %v1289 = vld [vmem:[%s7 + $0x3c] sm:$0xff]
    %v1290 = vld [vmem:[%s7 + $0x44] sm:$0xf]
    %v1291 = vld [vmem:[%s7 + $0x48] sm:$0xff]
    %v1292 = vld [vmem:[%s7 + $0x50] sm:$0xf]
    %v1293 = vld [vmem:[%s7 + $0x54] sm:$0xff]
    %v1294 = vld [vmem:[%s7 + $0x5c] sm:$0xf]
    %v1295 = vld [vmem:[%s7 + $0x60] sm:$0xff]
    %v1296 = vld [vmem:[%s7 + $0x68] sm:$0xf]
    %v1297 = vld [vmem:[%s7 + $0x6c] sm:$0xff]
    %v1298 = vld [vmem:[%s7 + $0x74] sm:$0xf]
    %v1299 = vld [vmem:[%s7 + $0x78] sm:$0xff]
    %v1300 = vld [vmem:[%s7 + $0x80] sm:$0xf]
    %v1301 = vld [vmem:[%s7 + $0x84] sm:$0xff]
    %v1302 = vld [vmem:[%s7 + $0x8c] sm:$0xf]
    %v1303 = vld [vmem:[%s7 + $0x90] sm:$0xff]
    %v1304 = vld [vmem:[%s7 + $0x98] sm:$0xf]
    %v1305 = vld [vmem:[%s7 + $0x9c] sm:$0xff]
    %v1306 = vld [vmem:[%s7 + $0xa4] sm:$0xf]
    %v1307 = vld [vmem:[%s7 + $0xa8] sm:$0xff]
    %v1308 = vld [vmem:[%s7 + $0xb0] sm:$0xf]
    %v1309 = vld [vmem:[%s7 + $0xb4] sm:$0xff]
    %v1310 = vld [vmem:[%s7 + $0xbc] sm:$0xf]
    %v1311 = vld [vmem:[%s7 + $0xc0] sm:$0xff]
    %v1312 = vld [vmem:[%s7 + $0xc8] sm:$0xf]
    %v1313 = vld [vmem:[%s7 + $0xcc] sm:$0xff]
    %v1314 = vld [vmem:[%s7 + $0xd4] sm:$0xf]
    %v1315 = vld [vmem:[%s7 + $0xd8] sm:$0xff]
    %v1316 = vld [vmem:[%s7 + $0xe0] sm:$0xf]
    %v1317 = vld [vmem:[%s7 + $0xe4] sm:$0xff]
    %v1318 = vld [vmem:[%s7 + $0xec] sm:$0xf]
    %v1319 = vld [vmem:[%s7 + $0xf0] sm:$0xff]
    %v1320 = vld [vmem:[%s7 + $0xf8] sm:$0xf]
    %v1321 = vld [vmem:[%s7 + $0xfc] sm:$0xff]
    %v1322 = vld [vmem:[%s7 + $0x104] sm:$0xf]
    %v1323 = vld [vmem:[%s7 + $0x108] sm:$0xff]
    %v1324 = vld [vmem:[%s7 + $0x110] sm:$0xf]
    %v1325 = vld [vmem:[%s7 + $0x114] sm:$0xff]
    %v1326 = vld [vmem:[%s7 + $0x11c] sm:$0xf]
    %v1327 = vld [vmem:[%s7 + $0x120] sm:$0xff]
    %v1328 = vld [vmem:[%s7 + $0x128] sm:$0xf]
    %v1329 = vld [vmem:[%s7 + $0x12c] sm:$0xff]
    %v1330 = vld [vmem:[%s7 + $0x134] sm:$0xf]
    %v1331 = vld [vmem:[%s7 + $0x138] sm:$0xff]
    %v1332 = vld [vmem:[%s7 + $0x140] sm:$0xf]
    %v1333 = vld [vmem:[%s7 + $0x144] sm:$0xff]
    %v1334 = vld [vmem:[%s7 + $0x14c] sm:$0xf]
    %v1335 = vld [vmem:[%s7 + $0x150] sm:$0xff]
    %v1336 = vld [vmem:[%s7 + $0x158] sm:$0xf]
    %v1337 = vld [vmem:[%s7 + $0x15c] sm:$0xff]
    %v1338 = vld [vmem:[%s7 + $0x164] sm:$0xf]
    %v1339 = vld [vmem:[%s7 + $0x168] sm:$0xff]
    %v1340 = vld [vmem:[%s7 + $0x170] sm:$0xf]
    %v1341 = vld [vmem:[%s7 + $0x174] sm:$0xff]
    %v1342 = vld [vmem:[%s7 + $0x17c] sm:$0xf]
    %v1343 = vld [vmem:[%s7 + $0x180] sm:$0xff]
    %v1344 = vld [vmem:[%s7 + $0x188] sm:$0xf]
    %v1345 = vld [vmem:[%s7 + $0x18c] sm:$0xff]
    %v1346 = vld [vmem:[%s7 + $0x194] sm:$0xf]
    %v1347 = vld [vmem:[%s7 + $0x198] sm:$0xff]
    %v1348 = vld [vmem:[%s7 + $0x1a0] sm:$0xf]
    %v1349 = vld [vmem:[%s7 + $0x1a4] sm:$0xff]
    %v1350 = vld [vmem:[%s7 + $0x1ac] sm:$0xf]
    %v1351 = vld [vmem:[%s7 + $0x1b0] sm:$0xff]
    %v1352 = vld [vmem:[%s7 + $0x1b8] sm:$0xf]
    %v1353 = vld [vmem:[%s7 + $0x1bc] sm:$0xff]
    %v1354 = vld [vmem:[%s7 + $0x1c4] sm:$0xf]
    %v1355 = vld [vmem:[%s7 + $0x1c8] sm:$0xff]
    %v1356 = vld [vmem:[%s7 + $0x1d0] sm:$0xf]
    %v1357 = vld [vmem:[%s7 + $0x1d4] sm:$0xff]
    %v1358 = vld [vmem:[%s7 + $0x1dc] sm:$0xf]
    %v1359 = vld [vmem:[%s7 + $0x1e0] sm:$0xff]
    %v1360 = vld [vmem:[%s7 + $0x1e8] sm:$0xf]
    %v1361 = vld [vmem:[%s7 + $0x1ec] sm:$0xff]
    %v1362 = vld [vmem:[%s7 + $0x1f4] sm:$0xf]
    %v1363 = vld [vmem:[%s7 + $0x1f8] sm:$0xff]
    %v1364 = vld [vmem:[%s7 + $0x200] sm:$0xf]
    %v1365 = vld [vmem:[%s7 + $0x204] sm:$0xff]
    %v1366 = vld [vmem:[%s7 + $0x20c] sm:$0xf]
    %v1367 = vld [vmem:[%s7 + $0x210] sm:$0xff]
    %v1368 = vld [vmem:[%s7 + $0x218] sm:$0xf]
    %v1369 = vld [vmem:[%s7 + $0x21c] sm:$0xff]
    %v1370 = vld [vmem:[%s7 + $0x224] sm:$0xf]
    %v1371 = vld [vmem:[%s7 + $0x228] sm:$0xff]
    %v1372 = vld [vmem:[%s7 + $0x230] sm:$0xf]
    %v1373 = vld [vmem:[%s7 + $0x234] sm:$0xff]
    %v1374 = vld [vmem:[%s7 + $0x23c] sm:$0xf]
    %v1375 = vperm.slane %v83, 3
    %v1376 = vperm.slane %v84, 3
    %v1377 = vperm.slane %v85, 3
    %v1474 = vunpack.c.l.b16 %v1279
    %v1475 = vunpack.c.h.b16 %v1279
    %v1476 = vunpack.c.l.b16 %v1280
    %v1477 = vunpack.c.l.b16 %v1281
    %v1478 = vunpack.c.h.b16 %v1281
    %v1479 = vunpack.c.l.b16 %v1282
    %v1480 = vunpack.c.l.b16 %v1283
    %v1481 = vunpack.c.h.b16 %v1283
    %v1482 = vunpack.c.l.b16 %v1284
    %v1483 = vunpack.c.l.b16 %v1285
    %v1484 = vunpack.c.h.b16 %v1285
    %v1485 = vunpack.c.l.b16 %v1286
    %v1486 = vunpack.c.l.b16 %v1287
    %v1487 = vunpack.c.h.b16 %v1287
    %v1488 = vunpack.c.l.b16 %v1288
    %v1489 = vunpack.c.l.b16 %v1289
    %v1490 = vunpack.c.h.b16 %v1289
    %v1491 = vunpack.c.l.b16 %v1290
    %v1492 = vunpack.c.l.b16 %v1291
    %v1493 = vunpack.c.h.b16 %v1291
    %v1494 = vunpack.c.l.b16 %v1292
    %v1495 = vunpack.c.l.b16 %v1293
    %v1496 = vunpack.c.h.b16 %v1293
    %v1497 = vunpack.c.l.b16 %v1294
    %v1498 = vunpack.c.l.b16 %v1295
    %v1499 = vunpack.c.h.b16 %v1295
    %v1500 = vunpack.c.l.b16 %v1296
    %v1501 = vunpack.c.l.b16 %v1297
    %v1502 = vunpack.c.h.b16 %v1297
    %v1503 = vunpack.c.l.b16 %v1298
    %v1504 = vunpack.c.l.b16 %v1299
    %v1505 = vunpack.c.h.b16 %v1299
    %v1506 = vunpack.c.l.b16 %v1300
    %v1507 = vunpack.c.l.b16 %v1301
    %v1508 = vunpack.c.h.b16 %v1301
    %v1509 = vunpack.c.l.b16 %v1302
    %v1510 = vunpack.c.l.b16 %v1303
    %v1511 = vunpack.c.h.b16 %v1303
    %v1512 = vunpack.c.l.b16 %v1304
    %v1513 = vunpack.c.l.b16 %v1305
    %v1514 = vunpack.c.h.b16 %v1305
    %v1515 = vunpack.c.l.b16 %v1306
    %v1516 = vunpack.c.l.b16 %v1307
    %v1517 = vunpack.c.h.b16 %v1307
    %v1518 = vunpack.c.l.b16 %v1308
    %v1519 = vunpack.c.l.b16 %v1309
    %v1520 = vunpack.c.h.b16 %v1309
    %v1521 = vunpack.c.l.b16 %v1310
    %v1522 = vunpack.c.l.b16 %v1311
    %v1523 = vunpack.c.h.b16 %v1311
    %v1524 = vunpack.c.l.b16 %v1312
    %v1525 = vunpack.c.l.b16 %v1313
    %v1526 = vunpack.c.h.b16 %v1313
    %v1527 = vunpack.c.l.b16 %v1314
    %v1528 = vunpack.c.l.b16 %v1315
    %v1529 = vunpack.c.h.b16 %v1315
    %v1530 = vunpack.c.l.b16 %v1316
    %v1531 = vunpack.c.l.b16 %v1317
    %v1532 = vunpack.c.h.b16 %v1317
    %v1533 = vunpack.c.l.b16 %v1318
    %v1534 = vunpack.c.l.b16 %v1319
    %v1535 = vunpack.c.h.b16 %v1319
    %v1536 = vunpack.c.l.b16 %v1320
    %v1537 = vunpack.c.l.b16 %v1321
    %v1538 = vunpack.c.h.b16 %v1321
    %v1539 = vunpack.c.l.b16 %v1322
    %v1540 = vunpack.c.l.b16 %v1323
    %v1541 = vunpack.c.h.b16 %v1323
    %v1542 = vunpack.c.l.b16 %v1324
    %v1543 = vunpack.c.l.b16 %v1325
    %v1544 = vunpack.c.h.b16 %v1325
    %v1545 = vunpack.c.l.b16 %v1326
    %v1546 = vunpack.c.l.b16 %v1327
    %v1547 = vunpack.c.h.b16 %v1327
    %v1548 = vunpack.c.l.b16 %v1328
    %v1549 = vunpack.c.l.b16 %v1329
    %v1550 = vunpack.c.h.b16 %v1329
    %v1551 = vunpack.c.l.b16 %v1330
    %v1552 = vunpack.c.l.b16 %v1331
    %v1553 = vunpack.c.h.b16 %v1331
    %v1554 = vunpack.c.l.b16 %v1332
    %v1555 = vunpack.c.l.b16 %v1333
    %v1556 = vunpack.c.h.b16 %v1333
    %v1557 = vunpack.c.l.b16 %v1334
    %v1558 = vunpack.c.l.b16 %v1335
    %v1559 = vunpack.c.h.b16 %v1335
    %v1560 = vunpack.c.l.b16 %v1336
    %v1561 = vunpack.c.l.b16 %v1337
    %v1562 = vunpack.c.h.b16 %v1337
    %v1563 = vunpack.c.l.b16 %v1338
    %v1564 = vunpack.c.l.b16 %v1339
    %v1565 = vunpack.c.h.b16 %v1339
    %v1566 = vunpack.c.l.b16 %v1340
    %v1567 = vunpack.c.l.b16 %v1341
    %v1568 = vunpack.c.h.b16 %v1341
    %v1569 = vunpack.c.l.b16 %v1342
    %v1570 = vunpack.c.l.b16 %v1343
    %v1571 = vunpack.c.h.b16 %v1343
    %v1572 = vunpack.c.l.b16 %v1344
    %v1573 = vunpack.c.l.b16 %v1345
    %v1574 = vunpack.c.h.b16 %v1345
    %v1575 = vunpack.c.l.b16 %v1346
    %v1576 = vunpack.c.l.b16 %v1347
    %v1577 = vunpack.c.h.b16 %v1347
    %v1578 = vunpack.c.l.b16 %v1348
    %v1579 = vunpack.c.l.b16 %v1349
    %v1580 = vunpack.c.h.b16 %v1349
    %v1581 = vunpack.c.l.b16 %v1350
    %v1582 = vunpack.c.l.b16 %v1351
    %v1583 = vunpack.c.h.b16 %v1351
    %v1584 = vunpack.c.l.b16 %v1352
    %v1585 = vunpack.c.l.b16 %v1353
    %v1586 = vunpack.c.h.b16 %v1353
    %v1587 = vunpack.c.l.b16 %v1354
    %v1588 = vunpack.c.l.b16 %v1355
    %v1589 = vunpack.c.h.b16 %v1355
    %v1590 = vunpack.c.l.b16 %v1356
    %v1591 = vunpack.c.l.b16 %v1357
    %v1592 = vunpack.c.h.b16 %v1357
    %v1593 = vunpack.c.l.b16 %v1358
    %v1594 = vunpack.c.l.b16 %v1359
    %v1595 = vunpack.c.h.b16 %v1359
    %v1596 = vunpack.c.l.b16 %v1360
    %v1597 = vunpack.c.l.b16 %v1361
    %v1598 = vunpack.c.h.b16 %v1361
    %v1599 = vunpack.c.l.b16 %v1362
    %v1600 = vunpack.c.l.b16 %v1363
    %v1601 = vunpack.c.h.b16 %v1363
    %v1602 = vunpack.c.l.b16 %v1364
    %v1603 = vunpack.c.l.b16 %v1365
    %v1604 = vunpack.c.h.b16 %v1365
    %v1605 = vunpack.c.l.b16 %v1366
    %v1606 = vunpack.c.l.b16 %v1367
    %v1607 = vunpack.c.h.b16 %v1367
    %v1608 = vunpack.c.l.b16 %v1368
    %v1609 = vunpack.c.l.b16 %v1369
    %v1610 = vunpack.c.h.b16 %v1369
    %v1611 = vunpack.c.l.b16 %v1370
    %v1612 = vunpack.c.l.b16 %v1371
    %v1613 = vunpack.c.h.b16 %v1371
    %v1614 = vunpack.c.l.b16 %v1372
    %v1615 = vunpack.c.l.b16 %v1373
    %v1616 = vunpack.c.h.b16 %v1373
    %v1617 = vunpack.c.l.b16 %v1374
    %v1618 = vpack.c.b16 %v1477, %v1474
    %v1619 = vpack.c.b16 %v1478, %v1475
    %v1620 = vpack.c.b16 %v1479, %v1476
    %v1621 = vpack.c.b16 %v1483, %v1480
    %v1622 = vpack.c.b16 %v1484, %v1481
    %v1623 = vpack.c.b16 %v1485, %v1482
    %v1624 = vpack.c.b16 %v1489, %v1486
    %v1625 = vpack.c.b16 %v1490, %v1487
    %v1626 = vpack.c.b16 %v1491, %v1488
    %v1627 = vpack.c.b16 %v1495, %v1492
    %v1628 = vpack.c.b16 %v1496, %v1493
    %v1629 = vpack.c.b16 %v1497, %v1494
    %v1630 = vpack.c.b16 %v1501, %v1498
    %v1631 = vpack.c.b16 %v1502, %v1499
    %v1632 = vpack.c.b16 %v1503, %v1500
    %v1633 = vpack.c.b16 %v1507, %v1504
    %v1634 = vpack.c.b16 %v1508, %v1505
    %v1635 = vpack.c.b16 %v1509, %v1506
    %v1636 = vpack.c.b16 %v1513, %v1510
    %v1637 = vpack.c.b16 %v1514, %v1511
    %v1638 = vpack.c.b16 %v1515, %v1512
    %v1639 = vpack.c.b16 %v1519, %v1516
    %v1640 = vpack.c.b16 %v1520, %v1517
    %v1641 = vpack.c.b16 %v1521, %v1518
    %v1642 = vpack.c.b16 %v1525, %v1522
    %v1643 = vpack.c.b16 %v1526, %v1523
    %v1644 = vpack.c.b16 %v1527, %v1524
    %v1645 = vpack.c.b16 %v1531, %v1528
    %v1646 = vpack.c.b16 %v1532, %v1529
    %v1647 = vpack.c.b16 %v1533, %v1530
    %v1648 = vpack.c.b16 %v1537, %v1534
    %v1649 = vpack.c.b16 %v1538, %v1535
    %v1650 = vpack.c.b16 %v1539, %v1536
    %v1651 = vpack.c.b16 %v1543, %v1540
    %v1652 = vpack.c.b16 %v1544, %v1541
    %v1653 = vpack.c.b16 %v1545, %v1542
    %v1654 = vpack.c.b16 %v1549, %v1546
    %v1655 = vpack.c.b16 %v1550, %v1547
    %v1656 = vpack.c.b16 %v1551, %v1548
    %v1657 = vpack.c.b16 %v1555, %v1552
    %v1658 = vpack.c.b16 %v1556, %v1553
    %v1659 = vpack.c.b16 %v1557, %v1554
    %v1660 = vpack.c.b16 %v1561, %v1558
    %v1661 = vpack.c.b16 %v1562, %v1559
    %v1662 = vpack.c.b16 %v1563, %v1560
    %v1663 = vpack.c.b16 %v1567, %v1564
    %v1664 = vpack.c.b16 %v1568, %v1565
    %v1665 = vpack.c.b16 %v1569, %v1566
    %v1666 = vpack.c.b16 %v1573, %v1570
    %v1667 = vpack.c.b16 %v1574, %v1571
    %v1668 = vpack.c.b16 %v1575, %v1572
    %v1669 = vpack.c.b16 %v1579, %v1576
    %v1670 = vpack.c.b16 %v1580, %v1577
    %v1671 = vpack.c.b16 %v1581, %v1578
    %v1672 = vpack.c.b16 %v1585, %v1582
    %v1673 = vpack.c.b16 %v1586, %v1583
    %v1674 = vpack.c.b16 %v1587, %v1584
    %v1675 = vpack.c.b16 %v1591, %v1588
    %v1676 = vpack.c.b16 %v1592, %v1589
    %v1677 = vpack.c.b16 %v1593, %v1590
    %v1678 = vpack.c.b16 %v1597, %v1594
    %v1679 = vpack.c.b16 %v1598, %v1595
    %v1680 = vpack.c.b16 %v1599, %v1596
    %v1681 = vpack.c.b16 %v1603, %v1600
    %v1682 = vpack.c.b16 %v1604, %v1601
    %v1683 = vpack.c.b16 %v1605, %v1602
    %v1684 = vpack.c.b16 %v1609, %v1606
    %v1685 = vpack.c.b16 %v1610, %v1607
    %v1686 = vpack.c.b16 %v1611, %v1608
    %v1687 = vpack.c.b16 %v1615, %v1612
    %v1688 = vpack.c.b16 %v1616, %v1613
    %v1689 = vpack.c.b16 %v1617, %v1614
    %1762 = vmatpush.bf16.msra.mxu0 %v1639
    %1763 = vmatpush.bf16.msra.mxu0 %v1636
    %1764 = vmatpush.bf16.msra.mxu0 %v1633
    %1765 = vmatpush.bf16.msra.mxu0 %v1630
    %1766 = vmatpush.bf16.msra.mxu0 %v1627
    %1767 = vmatpush.bf16.msra.mxu0 %v1624
    %1768 = vmatpush.bf16.msra.mxu0 %v1621
    %1769 = vmatpush.bf16.msra.mxu0 %v1618
    %1770 = vmatmul.bf16.gmra.mxu0 %v1276
    %v1771 = vpop.f32.mrf.mxu0
    %v1772 = vadd.f32 %v1375, %v1771
    %v1773 = vpop.f32.mrf.mxu0
    %1774 = vdwg.mxu0
    %1775 = vmatpush.bf16.msra.mxu0 %v1663
    %1776 = vmatpush.bf16.msra.mxu0 %v1660
    %1777 = vmatpush.bf16.msra.mxu0 %v1657
    %1778 = vmatpush.bf16.msra.mxu0 %v1654
    %1779 = vmatpush.bf16.msra.mxu0 %v1651
    %1780 = vmatpush.bf16.msra.mxu0 %v1648
    %1781 = vmatpush.bf16.msra.mxu0 %v1645
    %1782 = vmatpush.bf16.msra.mxu0 %v1642
    %1783 = vmatmul.bf16.gmra.mxu0 %v1277
    %v1784 = vpop.f32.mrf.mxu0
    %v1785 = vadd.f32 %v1772, %v1784
    %v1786 = vpop.f32.mrf.mxu0
    %1787 = vdwg.mxu0
    %1788 = vmatpush.bf16.msra.mxu0 %v1687
    %1789 = vmatpush.bf16.msra.mxu0 %v1684
    %1790 = vmatpush.bf16.msra.mxu0 %v1681
    %1791 = vmatpush.bf16.msra.mxu0 %v1678
    %1792 = vmatpush.bf16.msra.mxu0 %v1675
    %1793 = vmatpush.bf16.msra.mxu0 %v1672
    %1794 = vmatpush.bf16.msra.mxu0 %v1669
    %1795 = vmatpush.bf16.msra.mxu0 %v1666
    %1796 = vmatmul.bf16.gmra.mxu0 %v1278
    %v1797 = vpop.f32.mrf.mxu0
    %v1798 = vadd.f32 %v1785, %v1797
    %v1799 = vpop.f32.mrf.mxu0
    %1800 = vdwg.mxu0
    %1801 = vmatpush.bf16.msra.mxu0 %v1640
    %1802 = vmatpush.bf16.msra.mxu0 %v1637
    %1803 = vmatpush.bf16.msra.mxu0 %v1634
    %1804 = vmatpush.bf16.msra.mxu0 %v1631
    %1805 = vmatpush.bf16.msra.mxu0 %v1628
    %1806 = vmatpush.bf16.msra.mxu0 %v1625
    %1807 = vmatpush.bf16.msra.mxu0 %v1622
    %1808 = vmatpush.bf16.msra.mxu0 %v1619
    %1809 = vmatmul.bf16.gmra.mxu0 %v1276
    %v1810 = vpop.f32.mrf.mxu0
    %v1811 = vadd.f32 %v1376, %v1810
    %v1812 = vpop.f32.mrf.mxu0
    %1813 = vdwg.mxu0
    %1814 = vmatpush.bf16.msra.mxu0 %v1664
    %1815 = vmatpush.bf16.msra.mxu0 %v1661
    %1816 = vmatpush.bf16.msra.mxu0 %v1658
    %1817 = vmatpush.bf16.msra.mxu0 %v1655
    %1818 = vmatpush.bf16.msra.mxu0 %v1652
    %1819 = vmatpush.bf16.msra.mxu0 %v1649
    %1820 = vmatpush.bf16.msra.mxu0 %v1646
    %1821 = vmatpush.bf16.msra.mxu0 %v1643
    %1822 = vmatmul.bf16.gmra.mxu0 %v1277
    %v1823 = vpop.f32.mrf.mxu0
    %v1824 = vadd.f32 %v1811, %v1823
    %v1825 = vpop.f32.mrf.mxu0
    %1826 = vdwg.mxu0
    %1827 = vmatpush.bf16.msra.mxu0 %v1688
    %1828 = vmatpush.bf16.msra.mxu0 %v1685
    %1829 = vmatpush.bf16.msra.mxu0 %v1682
    %1830 = vmatpush.bf16.msra.mxu0 %v1679
    %1831 = vmatpush.bf16.msra.mxu0 %v1676
    %1832 = vmatpush.bf16.msra.mxu0 %v1673
    %1833 = vmatpush.bf16.msra.mxu0 %v1670
    %1834 = vmatpush.bf16.msra.mxu0 %v1667
    %1835 = vmatmul.bf16.gmra.mxu0 %v1278
    %v1836 = vpop.f32.mrf.mxu0
    %v1837 = vadd.f32 %v1824, %v1836
    %v1838 = vpop.f32.mrf.mxu0
    %1839 = vdwg.mxu0
    %1840 = vmatpush.bf16.msra.mxu0 %v1641
    %1841 = vmatpush.bf16.msra.mxu0 %v1638
    %1842 = vmatpush.bf16.msra.mxu0 %v1635
    %1843 = vmatpush.bf16.msra.mxu0 %v1632
    %1844 = vmatpush.bf16.msra.mxu0 %v1629
    %1845 = vmatpush.bf16.msra.mxu0 %v1626
    %1846 = vmatpush.bf16.msra.mxu0 %v1623
    %1847 = vmatpush.bf16.msra.mxu0 %v1620
    %1848 = vmatmul.bf16.gmra.mxu0 %v1276
    %v1849 = vpop.f32.mrf.mxu0
    %v1850 = vadd.f32 %v1377, %v1849
    %v1851 = vpop.f32.mrf.mxu0
    %1852 = vdwg.mxu0
    %1853 = vmatpush.bf16.msra.mxu0 %v1665
    %1854 = vmatpush.bf16.msra.mxu0 %v1662
    %1855 = vmatpush.bf16.msra.mxu0 %v1659
    %1856 = vmatpush.bf16.msra.mxu0 %v1656
    %1857 = vmatpush.bf16.msra.mxu0 %v1653
    %1858 = vmatpush.bf16.msra.mxu0 %v1650
    %1859 = vmatpush.bf16.msra.mxu0 %v1647
    %1860 = vmatpush.bf16.msra.mxu0 %v1644
    %1861 = vmatmul.bf16.gmra.mxu0 %v1277
    %v1862 = vpop.f32.mrf.mxu0
    %v1863 = vadd.f32 %v1850, %v1862
    %v1864 = vpop.f32.mrf.mxu0
    %1865 = vdwg.mxu0
    %1866 = vmatpush.bf16.msra.mxu0 %v1689
    %1867 = vmatpush.bf16.msra.mxu0 %v1686
    %1868 = vmatpush.bf16.msra.mxu0 %v1683
    %1869 = vmatpush.bf16.msra.mxu0 %v1680
    %1870 = vmatpush.bf16.msra.mxu0 %v1677
    %1871 = vmatpush.bf16.msra.mxu0 %v1674
    %1872 = vmatpush.bf16.msra.mxu0 %v1671
    %1873 = vmatpush.bf16.msra.mxu0 %v1668
    %1874 = vmatmul.bf16.gmra.mxu0 %v1278
    %v1875 = vpop.f32.mrf.mxu0
    %v1876 = vadd.f32 %v1863, %v1875
    %v1877 = vpop.f32.mrf.mxu0
    %1878 = vdwg.mxu0
    %v1879 = vadd.f32 %v1798, %v222
    %v1880 = vadd.f32 %v1837, %v223
    %v1881 = vadd.f32 %v1876, %v224
    %v1882 = vmul.f32 %v1879, %v1879
    %v1883 = vmul.f32 %v1880, %v1880
    %v1884 = vmul.f32 %v1881, %v1881
    %v1885 = vpack.c.bf16 %v1879, %v1879
    %v1886 = vpack.c.bf16 %v1880, %v1880
    %v1887 = vpack.c.bf16 %v1881, %v1881
    %v1888 = vpack.c.bf16 %v1882, %v1882
    %v1889 = vpack.c.bf16 %v1883, %v1883
    %v1890 = vpack.c.bf16 %v1884, %v1884
    %1891 = vmatpush.bf16.msra.mxu0 %v934
    %1892 = vmatpush.bf16.msra.mxu0 %v933
    %1893 = vmatpush.bf16.msra.mxu0 %v932
    %1894 = vmatpush.bf16.msra.mxu0 %v931
    %1895 = vmatpush.bf16.msra.mxu0 %v930
    %1896 = vmatpush.bf16.msra.mxu0 %v929
    %1897 = vmatpush.bf16.msra.mxu0 %v928
    %1898 = vmatpush.bf16.msra.mxu0 %v927
    %1899 = vmatmul.bf16.gmra.mxu0 %v1885
    %v1900 = vpop.f32.mrf.mxu0
    %v1901 = vadd.f32 0.0, %v1900
    %v1902 = vpop.f32.mrf.mxu0
    %1903 = vdwg.mxu0
    %1904 = vmatpush.bf16.msra.mxu0 %v942
    %1905 = vmatpush.bf16.msra.mxu0 %v941
    %1906 = vmatpush.bf16.msra.mxu0 %v940
    %1907 = vmatpush.bf16.msra.mxu0 %v939
    %1908 = vmatpush.bf16.msra.mxu0 %v938
    %1909 = vmatpush.bf16.msra.mxu0 %v937
    %1910 = vmatpush.bf16.msra.mxu0 %v936
    %1911 = vmatpush.bf16.msra.mxu0 %v935
    %1912 = vmatmul.bf16.gmra.mxu0 %v1886
    %v1913 = vpop.f32.mrf.mxu0
    %v1914 = vadd.f32 %v1901, %v1913
    %v1915 = vpop.f32.mrf.mxu0
    %1916 = vdwg.mxu0
    %1917 = vmatpush.bf16.msra.mxu0 %v950
    %1918 = vmatpush.bf16.msra.mxu0 %v949
    %1919 = vmatpush.bf16.msra.mxu0 %v948
    %1920 = vmatpush.bf16.msra.mxu0 %v947
    %1921 = vmatpush.bf16.msra.mxu0 %v946
    %1922 = vmatpush.bf16.msra.mxu0 %v945
    %1923 = vmatpush.bf16.msra.mxu0 %v944
    %1924 = vmatpush.bf16.msra.mxu0 %v943
    %1925 = vmatmul.bf16.gmra.mxu0 %v1887
    %v1926 = vpop.f32.mrf.mxu0
    %v1927 = vadd.f32 %v1914, %v1926
    %v1928 = vpop.f32.mrf.mxu0
    %1929 = vdwg.mxu0
    %1930 = vmatpush.bf16.msra.mxu0 %v958
    %1931 = vmatpush.bf16.msra.mxu0 %v957
    %1932 = vmatpush.bf16.msra.mxu0 %v956
    %1933 = vmatpush.bf16.msra.mxu0 %v955
    %1934 = vmatpush.bf16.msra.mxu0 %v954
    %1935 = vmatpush.bf16.msra.mxu0 %v953
    %1936 = vmatpush.bf16.msra.mxu0 %v952
    %1937 = vmatpush.bf16.msra.mxu0 %v951
    %1938 = vmatmul.bf16.gmra.mxu0 %v1888
    %v1939 = vpop.f32.mrf.mxu0
    %v1940 = vadd.f32 %v1927, %v1939
    %v1941 = vpop.f32.mrf.mxu0
    %1942 = vdwg.mxu0
    %1943 = vmatpush.bf16.msra.mxu0 %v966
    %1944 = vmatpush.bf16.msra.mxu0 %v965
    %1945 = vmatpush.bf16.msra.mxu0 %v964
    %1946 = vmatpush.bf16.msra.mxu0 %v963
    %1947 = vmatpush.bf16.msra.mxu0 %v962
    %1948 = vmatpush.bf16.msra.mxu0 %v961
    %1949 = vmatpush.bf16.msra.mxu0 %v960
    %1950 = vmatpush.bf16.msra.mxu0 %v959
    %1951 = vmatmul.bf16.gmra.mxu0 %v1889
    %v1952 = vpop.f32.mrf.mxu0
    %v1953 = vadd.f32 %v1940, %v1952
    %v1954 = vpop.f32.mrf.mxu0
    %1955 = vdwg.mxu0
    %1956 = vmatpush.bf16.msra.mxu0 %v974
    %1957 = vmatpush.bf16.msra.mxu0 %v973
    %1958 = vmatpush.bf16.msra.mxu0 %v972
    %1959 = vmatpush.bf16.msra.mxu0 %v971
    %1960 = vmatpush.bf16.msra.mxu0 %v970
    %1961 = vmatpush.bf16.msra.mxu0 %v969
    %1962 = vmatpush.bf16.msra.mxu0 %v968
    %1963 = vmatpush.bf16.msra.mxu0 %v967
    %1964 = vmatmul.bf16.gmra.mxu0 %v1890
    %v1965 = vpop.f32.mrf.mxu0
    %v1966 = vadd.f32 %v1953, %v1965
    %v1967 = vpop.f32.mrf.mxu0
    %1968 = vdwg.mxu0
    %v1969 = vmul.f32 %v1966, 0.03125
    %v1970 = vmul.f32 %v1969, %v1969
    %1972 = vrot.lane.b32.xlu0 %v1970, 12
    %v1973 = vpop.permute.xlu0 %1972
    %v1975 = vsub.f32 %v1969, %v1973
    %v1976 = vmax.f32 %v1975, 0.0
    %v1977 = vadd.f32 %v1976, 1e-05
    %v1978 = vrsqrt.pop %v1977
    %v1979 = vmul.f32 %v1978, %v1977
    %v1980 = vmul.f32 %v1979, %v1978
    %v1981 = vmul.f32 0.5, %v1980
    %v1982 = vsub.f32 1.5, %v1981
    %v1983 = vmul.f32 %v1978, %v1982
    %vm1984 = vweird.f32 %v1977
    %vm1985 = vweird.f32 %v1978
    %vm1986 = vmor %vm1984, %vm1985
    %v1987 = vsel %vm1986, %v1978, %v1983
    %v1988 = vsub.f32 0.0, %v1969
    %1990 = vrot.lane.b32.xlu0 %v1987, 116
    %v1991 = vpop.permute.xlu0 %1990
    %v1993 = vmul.f32 %v1988, %v1991
    %1995 = vrot.lane.b32.xlu0 %v1993, 12
    %v1996 = vpop.permute.xlu0 %1995
    %v1998 = vsel %vm526, %v1991, %v1996
    %v2000 = vsel %vm1131, %v1998, 0
    %2002 = vmatpush.msra.mxu0 0.0
    %2003 = vmatpush.msra.mxu0 0.0
    %2004 = vmatpush.msra.mxu0 0.0
    %2005 = vmatpush.msra.mxu0 0.0
    %2006 = vmatpush.msra.mxu0 0.0
    %2007 = vmatpush.msra.mxu0 0.0
    %2008 = vmatpush.msra.mxu0 0.0
    %2009 = vmatpush.msra.mxu0 0.0
    %2010 = vmatpush.msra.mxu0 0.0
    %2011 = vmatpush.msra.mxu0 0.0
    %2012 = vmatpush.msra.mxu0 0.0
    %2013 = vmatpush.msra.mxu0 0.0
    %2014 = vmatpush.msra.mxu0 0.0
    %2015 = vmatpush.msra.mxu0 %v720
    %2016 = vmatpush.msra.mxu0 %v714
    %2017 = vmatpush.msra.mxu0 %v708
    %2018 = vmatmul.f32.gmra.mxu0 %v2000
    %v2019 = vpop.f32.mrf.mxu0
    %v2020 = vadd.f32 0.0, %v2019
    %2021 = vdwg.mxu0
    %2022 = vmatpush.msra.mxu0 0.0
    %2023 = vmatpush.msra.mxu0 0.0
    %2024 = vmatpush.msra.mxu0 0.0
    %2025 = vmatpush.msra.mxu0 0.0
    %2026 = vmatpush.msra.mxu0 0.0
    %2027 = vmatpush.msra.mxu0 0.0
    %2028 = vmatpush.msra.mxu0 0.0
    %2029 = vmatpush.msra.mxu0 0.0
    %2030 = vmatpush.msra.mxu0 0.0
    %2031 = vmatpush.msra.mxu0 0.0
    %2032 = vmatpush.msra.mxu0 0.0
    %2033 = vmatpush.msra.mxu0 0.0
    %2034 = vmatpush.msra.mxu0 0.0
    %2035 = vmatpush.msra.mxu0 %v721
    %2036 = vmatpush.msra.mxu0 %v715
    %2037 = vmatpush.msra.mxu0 %v709
    %2038 = vmatmul.f32.gmra.mxu0 %v2000
    %v2039 = vpop.f32.mrf.mxu0
    %v2040 = vadd.f32 0.0, %v2039
    %2041 = vdwg.mxu0
    %2042 = vmatpush.msra.mxu0 0.0
    %2043 = vmatpush.msra.mxu0 0.0
    %2044 = vmatpush.msra.mxu0 0.0
    %2045 = vmatpush.msra.mxu0 0.0
    %2046 = vmatpush.msra.mxu0 0.0
    %2047 = vmatpush.msra.mxu0 0.0
    %2048 = vmatpush.msra.mxu0 0.0
    %2049 = vmatpush.msra.mxu0 0.0
    %2050 = vmatpush.msra.mxu0 0.0
    %2051 = vmatpush.msra.mxu0 0.0
    %2052 = vmatpush.msra.mxu0 0.0
    %2053 = vmatpush.msra.mxu0 0.0
    %2054 = vmatpush.msra.mxu0 0.0
    %2055 = vmatpush.msra.mxu0 %v722
    %2056 = vmatpush.msra.mxu0 %v716
    %2057 = vmatpush.msra.mxu0 %v710
    %2058 = vmatmul.f32.gmra.mxu0 %v2000
    %v2059 = vpop.f32.mrf.mxu0
    %v2060 = vadd.f32 0.0, %v2059
    %2061 = vdwg.mxu0
    %2062 = vmatpush.msra.mxu0 0.0
    %2063 = vmatpush.msra.mxu0 0.0
    %2064 = vmatpush.msra.mxu0 0.0
    %2065 = vmatpush.msra.mxu0 0.0
    %2066 = vmatpush.msra.mxu0 0.0
    %2067 = vmatpush.msra.mxu0 0.0
    %2068 = vmatpush.msra.mxu0 0.0
    %2069 = vmatpush.msra.mxu0 0.0
    %2070 = vmatpush.msra.mxu0 0.0
    %2071 = vmatpush.msra.mxu0 0.0
    %2072 = vmatpush.msra.mxu0 0.0
    %2073 = vmatpush.msra.mxu0 0.0
    %2074 = vmatpush.msra.mxu0 0.0
    %2075 = vmatpush.msra.mxu0 %v723
    %2076 = vmatpush.msra.mxu0 %v717
    %2077 = vmatpush.msra.mxu0 %v711
    %2078 = vmatmul.f32.gmra.mxu0 %v2000
    %v2079 = vpop.f32.mrf.mxu0
    %v2080 = vadd.f32 0.0, %v2079
    %2081 = vdwg.mxu0
    %2082 = vmatpush.msra.mxu0 0.0
    %2083 = vmatpush.msra.mxu0 0.0
    %2084 = vmatpush.msra.mxu0 0.0
    %2085 = vmatpush.msra.mxu0 0.0
    %2086 = vmatpush.msra.mxu0 0.0
    %2087 = vmatpush.msra.mxu0 0.0
    %2088 = vmatpush.msra.mxu0 0.0
    %2089 = vmatpush.msra.mxu0 0.0
    %2090 = vmatpush.msra.mxu0 0.0
    %2091 = vmatpush.msra.mxu0 0.0
    %2092 = vmatpush.msra.mxu0 0.0
    %2093 = vmatpush.msra.mxu0 0.0
    %2094 = vmatpush.msra.mxu0 0.0
    %2095 = vmatpush.msra.mxu0 %v724
    %2096 = vmatpush.msra.mxu0 %v718
    %2097 = vmatpush.msra.mxu0 %v712
    %2098 = vmatmul.f32.gmra.mxu0 %v2000
    %v2099 = vpop.f32.mrf.mxu0
    %v2100 = vadd.f32 0.0, %v2099
    %2101 = vdwg.mxu0
    %2102 = vmatpush.msra.mxu0 0.0
    %2103 = vmatpush.msra.mxu0 0.0
    %2104 = vmatpush.msra.mxu0 0.0
    %2105 = vmatpush.msra.mxu0 0.0
    %2106 = vmatpush.msra.mxu0 0.0
    %2107 = vmatpush.msra.mxu0 0.0
    %2108 = vmatpush.msra.mxu0 0.0
    %2109 = vmatpush.msra.mxu0 0.0
    %2110 = vmatpush.msra.mxu0 0.0
    %2111 = vmatpush.msra.mxu0 0.0
    %2112 = vmatpush.msra.mxu0 0.0
    %2113 = vmatpush.msra.mxu0 0.0
    %2114 = vmatpush.msra.mxu0 0.0
    %2115 = vmatpush.msra.mxu0 %v725
    %2116 = vmatpush.msra.mxu0 %v719
    %2117 = vmatpush.msra.mxu0 %v713
    %2118 = vmatmul.f32.gmra.mxu0 %v2000
    %v2119 = vpop.f32.mrf.mxu0
    %v2120 = vadd.f32 0.0, %v2119
    %2121 = vdwg.mxu0
    %v2122 = vmul.f32 %v1879, %v2020
    %v2123 = vmul.f32 %v1880, %v2040
    %v2124 = vmul.f32 %v1881, %v2060
    %v2125 = vadd.f32 %v2122, %v2080
    %v2126 = vadd.f32 %v2123, %v2100
    %v2127 = vadd.f32 %v2124, %v2120
    %v2128 = vperm.slane %v83, 4
    %v2129 = vperm.slane %v84, 4
    %v2130 = vperm.slane %v85, 4
    %v2131 = vmul.f32 %v2125, %v2128
    %v2132 = vmul.f32 %v2126, %v2129
    %v2133 = vmul.f32 %v2127, %v2130
    %v2134 = vperm.slane %v83, 5
    %v2135 = vperm.slane %v84, 5
    %v2136 = vperm.slane %v85, 5
    %v2137 = vadd.f32 %v2131, %v2134
    %v2138 = vadd.f32 %v2132, %v2135
    %v2139 = vadd.f32 %v2133, %v2136
    %v2140 = vxor.u32 %v2137, 2147483648
    %v2141 = vxor.u32 %v2138, 2147483648
    %v2142 = vxor.u32 %v2139, 2147483648
    %v2143 = vmul.f32 %v2140, 1.442695
    %v2144 = vpow.pop %v2143
    %v2145 = vmul.f32 %v2141, 1.442695
    %v2146 = vpow.pop %v2145
    %v2147 = vmul.f32 %v2142, 1.442695
    %v2148 = vpow.pop %v2147
    %v2149 = vadd.f32 %v2144, 1.0
    %v2150 = vadd.f32 %v2146, 1.0
    %v2151 = vadd.f32 %v2148, 1.0
    %v2152 = vrcp.pop %v2149
    %v2153 = vmul.f32 %v2149, %v2152
    %v2154 = vsub.f32 1.0, %v2153
    %v2155 = vmul.f32 %v2152, %v2154
    %v2156 = vadd.f32 %v2152, %v2155
    %vm2157 = vweird.f32 %v2149
    %vm2158 = vweird.f32 %v2152
    %vm2159 = vmor %vm2157, %vm2158
    %v2160 = vsel %vm2159, %v2152, %v2156
    %v2161 = vand.u32 2147483647, %v2149
    %vm2162 = vcmp.eq.f32.partialorder %v2161, 8.507059e+37
    %v2163 = vand.u32 %v2149, 2147483648
    %v2164 = vor.u32 1.1754944e-38, %v2163
    %v2165 = vsel %vm2162, %v2164, %v2160
    %v2166 = vmul.f32 1.0, %v2165
    %v2167 = vrcp.pop %v2150
    %v2168 = vmul.f32 %v2150, %v2167
    %v2169 = vsub.f32 1.0, %v2168
    %v2170 = vmul.f32 %v2167, %v2169
    %v2171 = vadd.f32 %v2167, %v2170
    %vm2172 = vweird.f32 %v2150
    %vm2173 = vweird.f32 %v2167
    %vm2174 = vmor %vm2172, %vm2173
    %v2175 = vsel %vm2174, %v2167, %v2171
    %v2176 = vand.u32 2147483647, %v2150
    %vm2177 = vcmp.eq.f32.partialorder %v2176, 8.507059e+37
    %v2178 = vand.u32 %v2150, 2147483648
    %v2179 = vor.u32 1.1754944e-38, %v2178
    %v2180 = vsel %vm2177, %v2179, %v2175
    %v2181 = vmul.f32 1.0, %v2180
    %v2182 = vrcp.pop %v2151
    %v2183 = vmul.f32 %v2151, %v2182
    %v2184 = vsub.f32 1.0, %v2183
    %v2185 = vmul.f32 %v2182, %v2184
    %v2186 = vadd.f32 %v2182, %v2185
    %vm2187 = vweird.f32 %v2151
    %vm2188 = vweird.f32 %v2182
    %vm2189 = vmor %vm2187, %vm2188
    %v2190 = vsel %vm2189, %v2182, %v2186
    %v2191 = vand.u32 2147483647, %v2151
    %vm2192 = vcmp.eq.f32.partialorder %v2191, 8.507059e+37
    %v2193 = vand.u32 %v2151, 2147483648
    %v2194 = vor.u32 1.1754944e-38, %v2193
    %v2195 = vsel %vm2192, %v2194, %v2190
    %v2196 = vmul.f32 1.0, %v2195
    %v2197 = vmul.f32 %v2137, %v2166
    %v2198 = vmul.f32 %v2138, %v2181
    %v2199 = vmul.f32 %v2139, %v2196
    %v2200 = vpack.c.bf16 %v611, %v611
    %v2201 = vld [vmem:[%s12] sm:$0xff]
    %v2202 = vld [vmem:[%s12 + $0x8] sm:$0xf]
    %v2203 = vld [vmem:[%s12 + $0xc] sm:$0x33]
    %v2204 = vld [vmem:[%s12 + $0x14] sm:$0x3]
    %v2209 = vunpack.c.l.b16 %v2201
    %v2210 = vunpack.c.h.b16 %v2201
    %v2211 = vunpack.c.l.b16 %v2202
    %v2212 = vunpack.c.l.b16 %v2203
    %v2213 = vunpack.c.h.b16 %v2203
    %v2214 = vunpack.c.l.b16 %v2204
    %v2215 = vpack.c.b16 %v2212, %v2209
    %v2216 = vpack.c.b16 %v2213, %v2210
    %v2217 = vpack.c.b16 %v2214, %v2211
    %v2219 = vsel %vm526, %v2200, 0
    %vm2221 = vcmask 1045504
    %v2223 = vsel %vm2221, %v2215, 0
    %v2226 = vsel %vm2221, %v2216, 0
    %v2229 = vsel %vm2221, %v2217, 0
    %2231 = vmatpush.bf16.msra.mxu0 0
    %2232 = vmatpush.bf16.msra.mxu0 0
    %2233 = vmatpush.bf16.msra.mxu0 0
    %2234 = vmatpush.bf16.msra.mxu0 0
    %2235 = vmatpush.bf16.msra.mxu0 0
    %2236 = vmatpush.bf16.msra.mxu0 0
    %2237 = vmatpush.bf16.msra.mxu0 0
    %2238 = vmatpush.bf16.msra.mxu0 %v2223
    %2239 = vmatmul.bf16.gmra.mxu0 %v2219
    %v2240 = vpop.f32.mrf.mxu0
    %v2241 = vadd.f32 0.0, %v2240
    %v2242 = vpop.f32.mrf.mxu0
    %2243 = vdwg.mxu0
    %2244 = vmatpush.bf16.msra.mxu0 0
    %2245 = vmatpush.bf16.msra.mxu0 0
    %2246 = vmatpush.bf16.msra.mxu0 0
    %2247 = vmatpush.bf16.msra.mxu0 0
    %2248 = vmatpush.bf16.msra.mxu0 0
    %2249 = vmatpush.bf16.msra.mxu0 0
    %2250 = vmatpush.bf16.msra.mxu0 0
    %2251 = vmatpush.bf16.msra.mxu0 %v2226
    %2252 = vmatmul.bf16.gmra.mxu0 %v2219
    %v2253 = vpop.f32.mrf.mxu0
    %v2254 = vadd.f32 0.0, %v2253
    %v2255 = vpop.f32.mrf.mxu0
    %2256 = vdwg.mxu0
    %2257 = vmatpush.bf16.msra.mxu0 0
    %2258 = vmatpush.bf16.msra.mxu0 0
    %2259 = vmatpush.bf16.msra.mxu0 0
    %2260 = vmatpush.bf16.msra.mxu0 0
    %2261 = vmatpush.bf16.msra.mxu0 0
    %2262 = vmatpush.bf16.msra.mxu0 0
    %2263 = vmatpush.bf16.msra.mxu0 0
    %2264 = vmatpush.bf16.msra.mxu0 %v2229
    %2265 = vmatmul.bf16.gmra.mxu0 %v2219
    %v2266 = vpop.f32.mrf.mxu0
    %v2267 = vadd.f32 0.0, %v2266
    %v2268 = vpop.f32.mrf.mxu0
    %2269 = vdwg.mxu0
    %v2270 = vmul.f32 %v2197, %v2241
    %v2271 = vmul.f32 %v2198, %v2254
    %v2272 = vmul.f32 %v2199, %v2267
    %v2273 = vpack.c.bf16 %v2270, %v2270
    %v2274 = vpack.c.bf16 %v2271, %v2271
    %v2275 = vpack.c.bf16 %v2272, %v2272
    %v2276 = vld [vmem:[%s8] sm:$0xf]
    %v2277 = vld [vmem:[%s8 + $0x4] sm:$0xf]
    %v2278 = vld [vmem:[%s8 + $0x8] sm:$0xf]
    %v2279 = vld [vmem:[%s8 + $0xc] sm:$0xf]
    %v2280 = vld [vmem:[%s8 + $0x10] sm:$0xf]
    %v2281 = vld [vmem:[%s8 + $0x14] sm:$0xf]
    %v2282 = vld [vmem:[%s8 + $0x18] sm:$0xf]
    %v2283 = vld [vmem:[%s8 + $0x1c] sm:$0xf]
    %v2284 = vld [vmem:[%s8 + $0x20] sm:$0xf]
    %v2285 = vld [vmem:[%s8 + $0x24] sm:$0xf]
    %v2286 = vld [vmem:[%s8 + $0x28] sm:$0xf]
    %v2287 = vld [vmem:[%s8 + $0x2c] sm:$0xf]
    %v2288 = vld [vmem:[%s8 + $0x30] sm:$0xf]
    %v2289 = vld [vmem:[%s8 + $0x34] sm:$0xf]
    %v2290 = vld [vmem:[%s8 + $0x38] sm:$0xf]
    %v2291 = vld [vmem:[%s8 + $0x3c] sm:$0xf]
    %v2292 = vld [vmem:[%s8 + $0x40] sm:$0xf]
    %v2293 = vld [vmem:[%s8 + $0x44] sm:$0xf]
    %v2294 = vld [vmem:[%s8 + $0x48] sm:$0xf]
    %v2295 = vld [vmem:[%s8 + $0x4c] sm:$0xf]
    %v2296 = vld [vmem:[%s8 + $0x50] sm:$0xf]
    %v2297 = vld [vmem:[%s8 + $0x54] sm:$0xf]
    %v2298 = vld [vmem:[%s8 + $0x58] sm:$0xf]
    %v2299 = vld [vmem:[%s8 + $0x5c] sm:$0xf]
    %v2300 = vld [vmem:[%s8 + $0x60] sm:$0xf]
    %v2301 = vld [vmem:[%s8 + $0x64] sm:$0xf]
    %v2302 = vld [vmem:[%s8 + $0x68] sm:$0xf]
    %v2303 = vld [vmem:[%s8 + $0x6c] sm:$0xf]
    %v2304 = vld [vmem:[%s8 + $0x70] sm:$0xf]
    %v2305 = vld [vmem:[%s8 + $0x74] sm:$0xf]
    %v2306 = vld [vmem:[%s8 + $0x78] sm:$0xf]
    %v2307 = vld [vmem:[%s8 + $0x7c] sm:$0xf]
    %v2308 = vld [vmem:[%s8 + $0x80] sm:$0xf]
    %v2309 = vld [vmem:[%s8 + $0x84] sm:$0xf]
    %v2310 = vld [vmem:[%s8 + $0x88] sm:$0xf]
    %v2311 = vld [vmem:[%s8 + $0x8c] sm:$0xf]
    %v2312 = vld [vmem:[%s8 + $0x90] sm:$0xf]
    %v2313 = vld [vmem:[%s8 + $0x94] sm:$0xf]
    %v2314 = vld [vmem:[%s8 + $0x98] sm:$0xf]
    %v2315 = vld [vmem:[%s8 + $0x9c] sm:$0xf]
    %v2316 = vld [vmem:[%s8 + $0xa0] sm:$0xf]
    %v2317 = vld [vmem:[%s8 + $0xa4] sm:$0xf]
    %v2318 = vld [vmem:[%s8 + $0xa8] sm:$0xf]
    %v2319 = vld [vmem:[%s8 + $0xac] sm:$0xf]
    %v2320 = vld [vmem:[%s8 + $0xb0] sm:$0xf]
    %v2321 = vld [vmem:[%s8 + $0xb4] sm:$0xf]
    %v2322 = vld [vmem:[%s8 + $0xb8] sm:$0xf]
    %v2323 = vld [vmem:[%s8 + $0xbc] sm:$0xf]
    %v2324 = vld [vmem:[%s9] sm:$0xff]
    %v2325 = vld [vmem:[%s9 + $0x8] sm:$0xf]
    %v2327 = vsel %vm526, %v611, 0
    %vm2329 = vcmask 1043456
    %v2331 = vsel %vm2329, %v2325, 0
    %2333 = vmatpush.msra.mxu0 0.0
    %2334 = vmatpush.msra.mxu0 0.0
    %2335 = vmatpush.msra.mxu0 0.0
    %2336 = vmatpush.msra.mxu0 0.0
    %2337 = vmatpush.msra.mxu0 0.0
    %2338 = vmatpush.msra.mxu0 0.0
    %2339 = vmatpush.msra.mxu0 0.0
    %2340 = vmatpush.msra.mxu0 0.0
    %2341 = vmatpush.msra.mxu0 0.0
    %2342 = vmatpush.msra.mxu0 0.0
    %2343 = vmatpush.msra.mxu0 0.0
    %2344 = vmatpush.msra.mxu0 0.0
    %2345 = vmatpush.msra.mxu0 0.0
    %2346 = vmatpush.msra.mxu0 0.0
    %2347 = vmatpush.msra.mxu0 %v2331
    %2348 = vmatpush.msra.mxu0 %v2324
    %2349 = vmatmul.f32.gmra.mxu0 %v2327
    %v2350 = vpop.f32.mrf.mxu0
    %v2351 = vadd.f32 0.0, %v2350
    %2352 = vdwg.mxu0
    %v2401 = vunpack.c.l.b16 %v2276
    %v2402 = vunpack.c.l.b16 %v2277
    %v2403 = vunpack.c.l.b16 %v2278
    %v2404 = vunpack.c.l.b16 %v2279
    %v2405 = vunpack.c.l.b16 %v2280
    %v2406 = vunpack.c.l.b16 %v2281
    %v2407 = vunpack.c.l.b16 %v2282
    %v2408 = vunpack.c.l.b16 %v2283
    %v2409 = vunpack.c.l.b16 %v2284
    %v2410 = vunpack.c.l.b16 %v2285
    %v2411 = vunpack.c.l.b16 %v2286
    %v2412 = vunpack.c.l.b16 %v2287
    %v2413 = vunpack.c.l.b16 %v2288
    %v2414 = vunpack.c.l.b16 %v2289
    %v2415 = vunpack.c.l.b16 %v2290
    %v2416 = vunpack.c.l.b16 %v2291
    %v2417 = vunpack.c.l.b16 %v2292
    %v2418 = vunpack.c.l.b16 %v2293
    %v2419 = vunpack.c.l.b16 %v2294
    %v2420 = vunpack.c.l.b16 %v2295
    %v2421 = vunpack.c.l.b16 %v2296
    %v2422 = vunpack.c.l.b16 %v2297
    %v2423 = vunpack.c.l.b16 %v2298
    %v2424 = vunpack.c.l.b16 %v2299
    %v2425 = vunpack.c.l.b16 %v2300
    %v2426 = vunpack.c.l.b16 %v2301
    %v2427 = vunpack.c.l.b16 %v2302
    %v2428 = vunpack.c.l.b16 %v2303
    %v2429 = vunpack.c.l.b16 %v2304
    %v2430 = vunpack.c.l.b16 %v2305
    %v2431 = vunpack.c.l.b16 %v2306
    %v2432 = vunpack.c.l.b16 %v2307
    %v2433 = vunpack.c.l.b16 %v2308
    %v2434 = vunpack.c.l.b16 %v2309
    %v2435 = vunpack.c.l.b16 %v2310
    %v2436 = vunpack.c.l.b16 %v2311
    %v2437 = vunpack.c.l.b16 %v2312
    %v2438 = vunpack.c.l.b16 %v2313
    %v2439 = vunpack.c.l.b16 %v2314
    %v2440 = vunpack.c.l.b16 %v2315
    %v2441 = vunpack.c.l.b16 %v2316
    %v2442 = vunpack.c.l.b16 %v2317
    %v2443 = vunpack.c.l.b16 %v2318
    %v2444 = vunpack.c.l.b16 %v2319
    %v2445 = vunpack.c.l.b16 %v2320
    %v2446 = vunpack.c.l.b16 %v2321
    %v2447 = vunpack.c.l.b16 %v2322
    %v2448 = vunpack.c.l.b16 %v2323
    %v2449 = vpack.c.b16 %v2402, %v2401
    %v2450 = vpack.c.b16 %v2404, %v2403
    %v2451 = vpack.c.b16 %v2406, %v2405
    %v2452 = vpack.c.b16 %v2408, %v2407
    %v2453 = vpack.c.b16 %v2410, %v2409
    %v2454 = vpack.c.b16 %v2412, %v2411
    %v2455 = vpack.c.b16 %v2414, %v2413
    %v2456 = vpack.c.b16 %v2416, %v2415
    %v2457 = vpack.c.b16 %v2418, %v2417
    %v2458 = vpack.c.b16 %v2420, %v2419
    %v2459 = vpack.c.b16 %v2422, %v2421
    %v2460 = vpack.c.b16 %v2424, %v2423
    %v2461 = vpack.c.b16 %v2426, %v2425
    %v2462 = vpack.c.b16 %v2428, %v2427
    %v2463 = vpack.c.b16 %v2430, %v2429
    %v2464 = vpack.c.b16 %v2432, %v2431
    %v2465 = vpack.c.b16 %v2434, %v2433
    %v2466 = vpack.c.b16 %v2436, %v2435
    %v2467 = vpack.c.b16 %v2438, %v2437
    %v2468 = vpack.c.b16 %v2440, %v2439
    %v2469 = vpack.c.b16 %v2442, %v2441
    %v2470 = vpack.c.b16 %v2444, %v2443
    %v2471 = vpack.c.b16 %v2446, %v2445
    %v2472 = vpack.c.b16 %v2448, %v2447
    %2497 = vmatpush.bf16.msra.mxu0 %v2456
    %2498 = vmatpush.bf16.msra.mxu0 %v2455
    %2499 = vmatpush.bf16.msra.mxu0 %v2454
    %2500 = vmatpush.bf16.msra.mxu0 %v2453
    %2501 = vmatpush.bf16.msra.mxu0 %v2452
    %2502 = vmatpush.bf16.msra.mxu0 %v2451
    %2503 = vmatpush.bf16.msra.mxu0 %v2450
    %2504 = vmatpush.bf16.msra.mxu0 %v2449
    %2505 = vmatmul.bf16.gmra.mxu0 %v2273
    %v2506 = vpop.f32.mrf.mxu0
    %v2507 = vadd.f32 %v2351, %v2506
    %v2508 = vpop.f32.mrf.mxu0
    %2509 = vdwg.mxu0
    %2510 = vmatpush.bf16.msra.mxu0 %v2464
    %2511 = vmatpush.bf16.msra.mxu0 %v2463
    %2512 = vmatpush.bf16.msra.mxu0 %v2462
    %2513 = vmatpush.bf16.msra.mxu0 %v2461
    %2514 = vmatpush.bf16.msra.mxu0 %v2460
    %2515 = vmatpush.bf16.msra.mxu0 %v2459
    %2516 = vmatpush.bf16.msra.mxu0 %v2458
    %2517 = vmatpush.bf16.msra.mxu0 %v2457
    %2518 = vmatmul.bf16.gmra.mxu0 %v2274
    %v2519 = vpop.f32.mrf.mxu0
    %v2520 = vadd.f32 %v2507, %v2519
    %v2521 = vpop.f32.mrf.mxu0
    %2522 = vdwg.mxu0
    %2523 = vmatpush.bf16.msra.mxu0 %v2472
    %2524 = vmatpush.bf16.msra.mxu0 %v2471
    %2525 = vmatpush.bf16.msra.mxu0 %v2470
    %2526 = vmatpush.bf16.msra.mxu0 %v2469
    %2527 = vmatpush.bf16.msra.mxu0 %v2468
    %2528 = vmatpush.bf16.msra.mxu0 %v2467
    %2529 = vmatpush.bf16.msra.mxu0 %v2466
    %2530 = vmatpush.bf16.msra.mxu0 %v2465
    %2531 = vmatmul.bf16.gmra.mxu0 %v2275
    %v2532 = vpop.f32.mrf.mxu0
    %v2533 = vadd.f32 %v2520, %v2532
    %v2534 = vpop.f32.mrf.mxu0
    %2535 = vdwg.mxu0
    %vm2536 = vcmask 130048
    %2537 = vst.msk [vmem:[#allocation7] sm:$0xff] %vm2536, %v2533
    // Predicated region
    $region62: #{moe_forward.1} parent=1 // pred_check
      _
    $region63: #{moe_forward.1} parent=1 // pred_check_branch
      %2539 = sbr.rel (0) target = $region65
    $region64: #{moe_forward.1} parent=1 // pred_region
      %2541 = vsyncadd [#allocation4], 0
      %s2543 = sshll.u32 [#allocation7], 4
      %s2544 = int_to_ptr.vmem [resolvable:$true] %s2543
      %s2545 = sshll.u32 %s13, 4
      %s2546 = int_to_ptr.hbm [resolvable:$true] %s2545
      %2548 = dma.vmem_to_hbm [thread:$0]  %s2544, 128, %s2546, [#allocation4]
    $region65: #{moe_forward.1} parent=1 // pred_fallthru
      _
    // Predicated region
    $region66: #{moe_forward.1} parent=1 // pred_check
      _
    $region67: #{moe_forward.1} parent=1 // pred_check_branch
      %2550 = sbr.rel (0) target = $region69
    $region68: #{moe_forward.1} parent=1 // pred_region
      _
    $region69: #{moe_forward.1} parent=1 // pred_fallthru
      _
    // Predicated region
    $region70: #{moe_forward.1} parent=1 // pred_check
      _
    $region71: #{moe_forward.1} parent=1 // pred_check_branch
      %2552 = sbr.rel (0) target = $region73
    $region72: #{moe_forward.1} parent=1 // pred_region
      %2554 = dma.done [#allocation4], 128
    $region73: #{moe_forward.1} parent=1 // pred_fallthru
      _
    // Predicated region
    $region74: #{moe_forward.1} parent=1 // pred_check
      _
    $region75: #{moe_forward.1} parent=1 // pred_check_branch
      %2556 = sbr.rel (0) target = $region77
    $region76: #{moe_forward.1} parent=1 // pred_region
      _
    $region77: #{moe_forward.1} parent=1 // pred_fallthru
      _
    %2557 = vsyncpa [#allocation3], 1
    %2558 = vsyncpa [#allocation6], 1
    %2559 = vsyncpa [#allocation4], 1

</llo_original>
